<compile_context>
chip_gen: v7x
topology: tpu7x:2x2x1
jax: 0.10.0
libtpu: 0.0.40
codegen_flags: <defaults>
</compile_context>

<pallas_src>
import functools
import math

import jax
import jax.numpy as jnp
from jax import lax
from jax.experimental import pallas as pl
from jax.experimental.pallas import tpu as pltpu


def _attn_decode_maxpool_kernel(x_ref, w_ref, bl_ref, out_ref,
                                q_ref, k_ref, v_ref, acc_ref, *, nhead):
    """Per-pixel temporal attention + folded linear + max over time.

    Layout: pixels on the lane axis (last dim), channels/time on sublanes.
      x_ref   : (N, C+1, TP)   compute dtype (bf16); last channel row is constant 1
      w_ref   : (2C + nhead*Kp, C+1)  fused [Wq*s | bq*s ; Wk | bk ; blockdiag(Wl) | 0]
      bl_ref  : (K, 1)  f32    final-linear bias (added once at the end)
      out_ref : (K, TP) f32    lane-dense output block
      q_ref/k_ref : VMEM (N, C, TP) scratch (bf16 on v6e/v7x, f32 on v5e)
      v_ref   : VMEM (N, nhead*Kp, TP) f32 scratch (wl already folded in)
      acc_ref : VMEM (K, TP) f32 running max over query time
    """
    n, _, tp = x_ref.shape
    c = q_ref.shape[1]
    k_cls = out_ref.shape[0]
    k_pad = v_ref.shape[1] // nhead
    dk = c // nhead

    w = w_ref[...]

    # ---- Phase 1: fused Q / K / (wl-folded V) projection, one MXU matmul per step.
    # Scale + biases are folded into w (x carries a constant-1 row).  Results go to
    # VMEM scratch so the query phase has bounded live ranges (no giant spill set).
    for t in range(n):
        proj = jnp.dot(w, x_ref[t], preferred_element_type=jnp.float32)
        q_ref[t] = proj[:c].astype(q_ref.dtype)
        k_ref[t] = proj[c:2 * c].astype(k_ref.dtype)
        v_ref[t] = proj[2 * c:]                       # (nhead*Kp, TP), wl applied

    # ---- Phase 2: per-pixel temporal attention, max over query time.
    acc_ref[...] = jnp.full(acc_ref.shape, -jnp.inf, acc_ref.dtype)

    def query_step(t, carry):
        q_t = q_ref[t]                                # (C, TP)
        y_t = None
        for h in range(nhead):
            lo = h * dk
            qh = q_t[lo:lo + dk]                      # (dk, TP)
            ks = k_ref[:, lo:lo + dk, :]              # (N, dk, TP)
            # Scores for all source steps at once (sublane-dense): (N, TP).
            s = jnp.sum((ks * qh[None]).astype(jnp.float32), axis=1)
            # Softmax over the source-time (sublane) axis on full vregs.
            mx = jnp.max(s, axis=0, keepdims=True)            # (1, TP)
            e = jnp.exp(s - mx)                               # (N, TP)
            denom = jnp.sum(e, axis=0, keepdims=True)         # (1, TP)
            inv = pl.reciprocal(denom, approx=True)           # EUP slot
            # PV with the wl-folded values; normalize once at the end.
            vh = v_ref[:, h * k_pad:h * k_pad + k_cls, :]     # (N, K, TP) f32
            pv = jnp.sum(e[:, None, :] * vh, axis=0)          # (K, TP)
            yh = pv * inv
            y_t = yh if y_t is None else y_t + yh
        acc_ref[...] = jnp.maximum(acc_ref[...], y_t)         # max over time
        return carry

    lax.fori_loop(0, n, query_step, 0)

    bl_b = jnp.broadcast_to(bl_ref[...], (k_cls, tp))
    out_ref[...] = (acc_ref[...] + bl_b).astype(out_ref.dtype)


def _device_kind():
    try:
        return jax.devices()[0].device_kind.lower()
    except Exception:  # pragma: no cover - CPU/interpret fallback
        return ""


def _default_qk_dtype():
    # bf16 elementwise score path only where the VALU is bf16-native (v6e / v7x);
    # v5e (and unknown chips) keep f32 elementwise to avoid widen/narrow converts.
    kind = _device_kind()
    return jnp.bfloat16 if ("v6" in kind or "v7" in kind) else jnp.float32


def _pick_tile_p(p_pad, *, max_tile, min_steps):
    """Largest lane-aligned tile dividing p_pad that keeps >= min_steps grid steps."""
    best = None
    for t in (2048, 1024, 512, 256, 128):
        if t <= max_tile and p_pad % t == 0:
            if p_pad // t >= min_steps:
                return t
            best = t          # smallest dividing tile seen -> most grid steps
    return best if best is not None else p_pad


def attn_decoding_maxpool(x_nchw, params, *, nhead=1, tile_p=None,
                          compute_dtype=jnp.bfloat16, qk_dtype=None):
    n, c, h, w = x_nchw.shape
    k_cls = params['wl'].shape[0]
    assert c % nhead == 0
    dk = c // nhead
    assert dk % 8 == 0, "head dim must be a multiple of 8 for aligned sublane slices"
    p = h * w

    if qk_dtype is None:
        qk_dtype = _default_qk_dtype()
    kind = _device_kind()

    # Pixels on the lane axis: (N, C, H, W) -> (N, C, P); append a constant-1 channel
    # row so the Q/K biases fold into the projection matmul.
    x_ncp = x_nchw.reshape(n, c, p)
    x_aug = jnp.concatenate(
        [x_ncp, jnp.ones((n, 1, p), x_ncp.dtype)], axis=1).astype(compute_dtype)
    p_pad = ((p + 127) // 128) * 128
    if p_pad != p:
        x_aug = jnp.pad(x_aug, ((0, 0), (0, 0), (0, p_pad - p)))

    if tile_p is None:
        if "v7" in kind:            # 2 TensorCores: keep >= 2 pipelined steps per core
            tile_p = _pick_tile_p(p_pad, max_tile=1024, min_steps=4)
        else:
            tile_p = _pick_tile_p(p_pad, max_tile=2048, min_steps=2)
    assert p_pad % tile_p == 0 and tile_p % 128 == 0

    # Fold 1/sqrt(dk) into Wq / bq (free in the wrapper, removes in-kernel scaling).
    scale = 1.0 / math.sqrt(dk)
    wq = params['wq'] * scale
    bq = params['bq'] * scale
    wk, bk = params['wk'], params['bk']
    wl = params['wl']

    # wl-fold: since encode_value=False, the final Linear commutes with the softmax-
    # weighted sum over time; per head it's a block-diagonal copy of wl's head columns
    # (padded to a multiple of 8 rows when nhead > 1 so in-kernel slices stay aligned).
    k_pad = k_cls if nhead == 1 else ((k_cls + 7) // 8) * 8
    blocks = []
    for hh in range(nhead):
        z = jnp.zeros((k_pad, c), wl.dtype)
        z = z.at[:k_cls, hh * dk:(hh + 1) * dk].set(wl[:, hh * dk:(hh + 1) * dk])
        blocks.append(z)
    wv = jnp.concatenate(blocks, axis=0)                      # (nhead*Kp, C)

    # Single fused projection weight with a trailing bias column (x has a 1-row).
    w_core = jnp.concatenate([wq, wk, wv], axis=0)            # (rows, C)
    b_col = jnp.concatenate(
        [bq, bk, jnp.zeros((nhead * k_pad,), wl.dtype)])[:, None]
    w_all = jnp.concatenate([w_core, b_col], axis=1).astype(compute_dtype)
    b_l = params['bl'].reshape(k_cls, 1).astype(jnp.float32)

    rows = 2 * c + nhead * k_pad
    kernel = functools.partial(_attn_decode_maxpool_kernel, nhead=nhead)
    out = pl.pallas_call(
        kernel,
        out_shape=jax.ShapeDtypeStruct((k_cls, p_pad), jnp.float32),
        grid_spec=pltpu.PrefetchScalarGridSpec(
            num_scalar_prefetch=0,
            grid=(p_pad // tile_p,),
            in_specs=[
                pl.BlockSpec((n, c + 1, tile_p), lambda i: (0, 0, i)),  # x, pixel-in-lanes
                pl.BlockSpec((rows, c + 1), lambda i: (0, 0)),          # fused weights
                pl.BlockSpec((k_cls, 1), lambda i: (0, 0)),             # bl
            ],
            out_specs=pl.BlockSpec((k_cls, tile_p), lambda i: (0, i)),
            scratch_shapes=[
                pltpu.VMEM((n, c, tile_p), qk_dtype),                   # projected Q
                pltpu.VMEM((n, c, tile_p), qk_dtype),                   # projected K
                pltpu.VMEM((n, nhead * k_pad, tile_p), jnp.float32),    # wl-folded V
                pltpu.VMEM((k_cls, tile_p), jnp.float32),               # running max
            ],
        ),
        compiler_params=pltpu.CompilerParams(dimension_semantics=("parallel",)),
    )(x_aug, w_all, b_l)

    # (K, P) -> (1, H, W, K)   (matches torch.max(..., dim=0, keepdim=True))
    out = out[:, :p].reshape(k_cls, h, w)
    return jnp.transpose(out, (1, 2, 0))[None]


def _reference(x_nchw, params, nhead):
    """Pure-JAX f32 reference with the PyTorch module's math, for validation."""
    n, c, h, w = x_nchw.shape
    dk = c // nhead
    x = jnp.transpose(x_nchw, (2, 3, 0, 1)).reshape(h * w, n, c)   # (P, N, C)
    q = x @ params['wq'].T + params['bq'].reshape(1, 1, c)
    k = x @ params['wk'].T + params['bk'].reshape(1, 1, c)
    q = q.reshape(-1, n, nhead, dk)
    k = k.reshape(-1, n, nhead, dk)
    v = x.reshape(-1, n, nhead, dk)
    s = jnp.einsum('pnhd,pmhd->phnm', q, k) / math.sqrt(dk)
    pa = jax.nn.softmax(s, axis=-1)
    o = jnp.einsum('phnm,pmhd->pnhd', pa, v).reshape(-1, n, c)
    y = o @ params['wl'].T + params['bl'].reshape(1, 1, -1)
    return jnp.max(y, axis=1).reshape(1, h, w, -1)


if __name__ == "__main__":
    # Small shapes consistent with the module: N time steps, C=inplanes, HxW spatial.
    N, C, H, W = 8, 32, 16, 16
    NUM_CLASSES, NHEAD = 4, 1

    keys = jax.random.split(jax.random.PRNGKey(0), 7)
    x = jax.random.normal(keys[0], (N, C, H, W), jnp.float32)
    params = {
        'wq': jax.random.normal(keys[1], (C, C), jnp.float32) / math.sqrt(C),
        'bq': jax.random.normal(keys[2], (C,), jnp.float32) * 0.02,
        'wk': jax.random.normal(keys[3], (C, C), jnp.float32) / math.sqrt(C),
        'bk': jax.random.normal(keys[4], (C,), jnp.float32) * 0.02,
        'wl': jax.random.normal(keys[5], (NUM_CLASSES, C), jnp.float32) / math.sqrt(C),
        'bl': jax.random.normal(keys[6], (NUM_CLASSES,), jnp.float32) * 0.02,
    }

    out = jax.block_until_ready(attn_decoding_maxpool(x, params, nhead=NHEAD))
    ref = _reference(x, params, NHEAD)

    assert out.shape == (1, H, W, NUM_CLASSES), out.shape
    # bf16 MXU/HBM (+ bf16 score path on v6e/v7x) vs f32 reference: loosened tolerance.
    err = float(jnp.max(jnp.abs(out - ref)))
    assert jnp.allclose(out, ref, atol=5e-2, rtol=5e-2), err
    print("KERNEL_OK")
</pallas_src>

<mosaic_0001>
module attributes {stable_mosaic.version = 11 : i64} {
  func.func @_attn_decode_maxpool_kernel(%arg0: i32, %arg1: memref<8x33x128xbf16, #tpu.memory_space<vmem>>, %arg2: memref<68x33xbf16, #tpu.memory_space<vmem>>, %arg3: memref<4x1xf32, #tpu.memory_space<vmem>>, %arg4: memref<4x128xf32, #tpu.memory_space<vmem>>, %arg5: memref<8x32x128xf32, #tpu.memory_space<vmem>>, %arg6: memref<8x32x128xf32, #tpu.memory_space<vmem>>, %arg7: memref<8x4x128xf32, #tpu.memory_space<vmem>>, %arg8: memref<4x128xf32, #tpu.memory_space<vmem>>) attributes {dimension_semantics = [#tpu.dimension_semantics<parallel>], iteration_bounds = array<i64: 2>, scalar_prefetch = 0 : i64, scratch_operands = 4 : i64, tpu.core_type = #tpu.core_type<tc>, window_params = [{transform_indices = @transform_0, window_bounds = array<i64: 8, 33, 128>}, {pipeline_mode = #tpu.pipeline_mode<synchronous>, transform_indices = @transform_1, window_bounds = array<i64: 68, 33>}, {pipeline_mode = #tpu.pipeline_mode<synchronous>, transform_indices = @transform_2, window_bounds = array<i64: 4, 1>}, {transform_indices = @transform_3, window_bounds = array<i64: 4, 128>}]} {
    %c0 = arith.constant 0 : index
    %c0_0 = arith.constant 0 : index
    %0 = vector.load %arg2[%c0, %c0_0] : memref<68x33xbf16, #tpu.memory_space<vmem>>, vector<68x33xbf16>
    %c0_1 = arith.constant 0 : index
    %c0_2 = arith.constant 0 : index
    %c0_3 = arith.constant 0 : index
    %1 = vector.load %arg1[%c0_1, %c0_2, %c0_3] : memref<8x33x128xbf16, #tpu.memory_space<vmem>>, vector<1x33x128xbf16>
    %2 = vector.shape_cast %1 : vector<1x33x128xbf16> to vector<33x128xbf16>
    %cst = arith.constant dense<0.000000e+00> : vector<68x128xf32>
    %3 = tpu.matmul %0, %2, %cst {dimension_numbers = #tpu.dot_dimension_numbers<[1], [0], [0], [1], [0, 0, 1, 1], [], []>} : vector<68x33xbf16>, vector<33x128xbf16>, vector<68x128xf32> -> vector<68x128xf32>
    %4 = vector.extract_strided_slice %3 {offsets = [0, 0], sizes = [32, 128], strides = [1, 1]} : vector<68x128xf32> to vector<32x128xf32>
    %c0_4 = arith.constant 0 : index
    %c0_5 = arith.constant 0 : index
    %c0_6 = arith.constant 0 : index
    %5 = vector.load %arg5[%c0_4, %c0_5, %c0_6] : memref<8x32x128xf32, #tpu.memory_space<vmem>>, vector<1x32x128xf32>
    %6 = vector.shape_cast %5 : vector<1x32x128xf32> to vector<32x128xf32>
    %7 = vector.shape_cast %4 : vector<32x128xf32> to vector<1x32x128xf32>
    tpu.vector_store %arg5[%c0_4, %c0_5, %c0_6], %7 {strides = array<i32>} : memref<8x32x128xf32, #tpu.memory_space<vmem>>, vector<1x32x128xf32>,
    %8 = vector.extract_strided_slice %3 {offsets = [32, 0], sizes = [32, 128], strides = [1, 1]} : vector<68x128xf32> to vector<32x128xf32>
    %c0_7 = arith.constant 0 : index
    %c0_8 = arith.constant 0 : index
    %c0_9 = arith.constant 0 : index
    %9 = vector.load %arg6[%c0_7, %c0_8, %c0_9] : memref<8x32x128xf32, #tpu.memory_space<vmem>>, vector<1x32x128xf32>
    %10 = vector.shape_cast %9 : vector<1x32x128xf32> to vector<32x128xf32>
    %11 = vector.shape_cast %8 : vector<32x128xf32> to vector<1x32x128xf32>
    tpu.vector_store %arg6[%c0_7, %c0_8, %c0_9], %11 {strides = array<i32>} : memref<8x32x128xf32, #tpu.memory_space<vmem>>, vector<1x32x128xf32>,
    %12 = vector.extract_strided_slice %3 {offsets = [64, 0], sizes = [4, 128], strides = [1, 1]} : vector<68x128xf32> to vector<4x128xf32>
    %c0_10 = arith.constant 0 : index
    %c0_11 = arith.constant 0 : index
    %c0_12 = arith.constant 0 : index
    %13 = vector.load %arg7[%c0_10, %c0_11, %c0_12] : memref<8x4x128xf32, #tpu.memory_space<vmem>>, vector<1x4x128xf32>
    %14 = vector.shape_cast %13 : vector<1x4x128xf32> to vector<4x128xf32>
    %15 = vector.shape_cast %12 : vector<4x128xf32> to vector<1x4x128xf32>
    tpu.vector_store %arg7[%c0_10, %c0_11, %c0_12], %15 {strides = array<i32>} : memref<8x4x128xf32, #tpu.memory_space<vmem>>, vector<1x4x128xf32>,
    %c1 = arith.constant 1 : index
    %c0_13 = arith.constant 0 : index
    %c0_14 = arith.constant 0 : index
    %16 = vector.load %arg1[%c1, %c0_13, %c0_14] : memref<8x33x128xbf16, #tpu.memory_space<vmem>>, vector<1x33x128xbf16>
    %17 = vector.shape_cast %16 : vector<1x33x128xbf16> to vector<33x128xbf16>
    %cst_15 = arith.constant dense<0.000000e+00> : vector<68x128xf32>
    %18 = tpu.matmul %0, %17, %cst_15 {dimension_numbers = #tpu.dot_dimension_numbers<[1], [0], [0], [1], [0, 0, 1, 1], [], []>} : vector<68x33xbf16>, vector<33x128xbf16>, vector<68x128xf32> -> vector<68x128xf32>
    %19 = vector.extract_strided_slice %18 {offsets = [0, 0], sizes = [32, 128], strides = [1, 1]} : vector<68x128xf32> to vector<32x128xf32>
    %c1_16 = arith.constant 1 : index
    %c0_17 = arith.constant 0 : index
    %c0_18 = arith.constant 0 : index
    %20 = vector.load %arg5[%c1_16, %c0_17, %c0_18] : memref<8x32x128xf32, #tpu.memory_space<vmem>>, vector<1x32x128xf32>
    %21 = vector.shape_cast %20 : vector<1x32x128xf32> to vector<32x128xf32>
    %22 = vector.shape_cast %19 : vector<32x128xf32> to vector<1x32x128xf32>
    tpu.vector_store %arg5[%c1_16, %c0_17, %c0_18], %22 {strides = array<i32>} : memref<8x32x128xf32, #tpu.memory_space<vmem>>, vector<1x32x128xf32>,
    %23 = vector.extract_strided_slice %18 {offsets = [32, 0], sizes = [32, 128], strides = [1, 1]} : vector<68x128xf32> to vector<32x128xf32>
    %c1_19 = arith.constant 1 : index
    %c0_20 = arith.constant 0 : index
    %c0_21 = arith.constant 0 : index
    %24 = vector.load %arg6[%c1_19, %c0_20, %c0_21] : memref<8x32x128xf32, #tpu.memory_space<vmem>>, vector<1x32x128xf32>
    %25 = vector.shape_cast %24 : vector<1x32x128xf32> to vector<32x128xf32>
    %26 = vector.shape_cast %23 : vector<32x128xf32> to vector<1x32x128xf32>
    tpu.vector_store %arg6[%c1_19, %c0_20, %c0_21], %26 {strides = array<i32>} : memref<8x32x128xf32, #tpu.memory_space<vmem>>, vector<1x32x128xf32>,
    %27 = vector.extract_strided_slice %18 {offsets = [64, 0], sizes = [4, 128], strides = [1, 1]} : vector<68x128xf32> to vector<4x128xf32>
    %c1_22 = arith.constant 1 : index
    %c0_23 = arith.constant 0 : index
    %c0_24 = arith.constant 0 : index
    %28 = vector.load %arg7[%c1_22, %c0_23, %c0_24] : memref<8x4x128xf32, #tpu.memory_space<vmem>>, vector<1x4x128xf32>
    %29 = vector.shape_cast %28 : vector<1x4x128xf32> to vector<4x128xf32>
    %30 = vector.shape_cast %27 : vector<4x128xf32> to vector<1x4x128xf32>
    tpu.vector_store %arg7[%c1_22, %c0_23, %c0_24], %30 {strides = array<i32>} : memref<8x4x128xf32, #tpu.memory_space<vmem>>, vector<1x4x128xf32>,
    %c2 = arith.constant 2 : index
    %c0_25 = arith.constant 0 : index
    %c0_26 = arith.constant 0 : index
    %31 = vector.load %arg1[%c2, %c0_25, %c0_26] : memref<8x33x128xbf16, #tpu.memory_space<vmem>>, vector<1x33x128xbf16>
    %32 = vector.shape_cast %31 : vector<1x33x128xbf16> to vector<33x128xbf16>
    %cst_27 = arith.constant dense<0.000000e+00> : vector<68x128xf32>
    %33 = tpu.matmul %0, %32, %cst_27 {dimension_numbers = #tpu.dot_dimension_numbers<[1], [0], [0], [1], [0, 0, 1, 1], [], []>} : vector<68x33xbf16>, vector<33x128xbf16>, vector<68x128xf32> -> vector<68x128xf32>
    %34 = vector.extract_strided_slice %33 {offsets = [0, 0], sizes = [32, 128], strides = [1, 1]} : vector<68x128xf32> to vector<32x128xf32>
    %c2_28 = arith.constant 2 : index
    %c0_29 = arith.constant 0 : index
    %c0_30 = arith.constant 0 : index
    %35 = vector.load %arg5[%c2_28, %c0_29, %c0_30] : memref<8x32x128xf32, #tpu.memory_space<vmem>>, vector<1x32x128xf32>
    %36 = vector.shape_cast %35 : vector<1x32x128xf32> to vector<32x128xf32>
    %37 = vector.shape_cast %34 : vector<32x128xf32> to vector<1x32x128xf32>
    tpu.vector_store %arg5[%c2_28, %c0_29, %c0_30], %37 {strides = array<i32>} : memref<8x32x128xf32, #tpu.memory_space<vmem>>, vector<1x32x128xf32>,
    %38 = vector.extract_strided_slice %33 {offsets = [32, 0], sizes = [32, 128], strides = [1, 1]} : vector<68x128xf32> to vector<32x128xf32>
    %c2_31 = arith.constant 2 : index
    %c0_32 = arith.constant 0 : index
    %c0_33 = arith.constant 0 : index
    %39 = vector.load %arg6[%c2_31, %c0_32, %c0_33] : memref<8x32x128xf32, #tpu.memory_space<vmem>>, vector<1x32x128xf32>
    %40 = vector.shape_cast %39 : vector<1x32x128xf32> to vector<32x128xf32>
    %41 = vector.shape_cast %38 : vector<32x128xf32> to vector<1x32x128xf32>
    tpu.vector_store %arg6[%c2_31, %c0_32, %c0_33], %41 {strides = array<i32>} : memref<8x32x128xf32, #tpu.memory_space<vmem>>, vector<1x32x128xf32>,
    %42 = vector.extract_strided_slice %33 {offsets = [64, 0], sizes = [4, 128], strides = [1, 1]} : vector<68x128xf32> to vector<4x128xf32>
    %c2_34 = arith.constant 2 : index
    %c0_35 = arith.constant 0 : index
    %c0_36 = arith.constant 0 : index
    %43 = vector.load %arg7[%c2_34, %c0_35, %c0_36] : memref<8x4x128xf32, #tpu.memory_space<vmem>>, vector<1x4x128xf32>
    %44 = vector.shape_cast %43 : vector<1x4x128xf32> to vector<4x128xf32>
    %45 = vector.shape_cast %42 : vector<4x128xf32> to vector<1x4x128xf32>
    tpu.vector_store %arg7[%c2_34, %c0_35, %c0_36], %45 {strides = array<i32>} : memref<8x4x128xf32, #tpu.memory_space<vmem>>, vector<1x4x128xf32>,
    %c3 = arith.constant 3 : index
    %c0_37 = arith.constant 0 : index
    %c0_38 = arith.constant 0 : index
    %46 = vector.load %arg1[%c3, %c0_37, %c0_38] : memref<8x33x128xbf16, #tpu.memory_space<vmem>>, vector<1x33x128xbf16>
    %47 = vector.shape_cast %46 : vector<1x33x128xbf16> to vector<33x128xbf16>
    %cst_39 = arith.constant dense<0.000000e+00> : vector<68x128xf32>
    %48 = tpu.matmul %0, %47, %cst_39 {dimension_numbers = #tpu.dot_dimension_numbers<[1], [0], [0], [1], [0, 0, 1, 1], [], []>} : vector<68x33xbf16>, vector<33x128xbf16>, vector<68x128xf32> -> vector<68x128xf32>
    %49 = vector.extract_strided_slice %48 {offsets = [0, 0], sizes = [32, 128], strides = [1, 1]} : vector<68x128xf32> to vector<32x128xf32>
    %c3_40 = arith.constant 3 : index
    %c0_41 = arith.constant 0 : index
    %c0_42 = arith.constant 0 : index
    %50 = vector.load %arg5[%c3_40, %c0_41, %c0_42] : memref<8x32x128xf32, #tpu.memory_space<vmem>>, vector<1x32x128xf32>
    %51 = vector.shape_cast %50 : vector<1x32x128xf32> to vector<32x128xf32>
    %52 = vector.shape_cast %49 : vector<32x128xf32> to vector<1x32x128xf32>
    tpu.vector_store %arg5[%c3_40, %c0_41, %c0_42], %52 {strides = array<i32>} : memref<8x32x128xf32, #tpu.memory_space<vmem>>, vector<1x32x128xf32>,
    %53 = vector.extract_strided_slice %48 {offsets = [32, 0], sizes = [32, 128], strides = [1, 1]} : vector<68x128xf32> to vector<32x128xf32>
    %c3_43 = arith.constant 3 : index
    %c0_44 = arith.constant 0 : index
    %c0_45 = arith.constant 0 : index
    %54 = vector.load %arg6[%c3_43, %c0_44, %c0_45] : memref<8x32x128xf32, #tpu.memory_space<vmem>>, vector<1x32x128xf32>
    %55 = vector.shape_cast %54 : vector<1x32x128xf32> to vector<32x128xf32>
    %56 = vector.shape_cast %53 : vector<32x128xf32> to vector<1x32x128xf32>
    tpu.vector_store %arg6[%c3_43, %c0_44, %c0_45], %56 {strides = array<i32>} : memref<8x32x128xf32, #tpu.memory_space<vmem>>, vector<1x32x128xf32>,
    %57 = vector.extract_strided_slice %48 {offsets = [64, 0], sizes = [4, 128], strides = [1, 1]} : vector<68x128xf32> to vector<4x128xf32>
    %c3_46 = arith.constant 3 : index
    %c0_47 = arith.constant 0 : index
    %c0_48 = arith.constant 0 : index
    %58 = vector.load %arg7[%c3_46, %c0_47, %c0_48] : memref<8x4x128xf32, #tpu.memory_space<vmem>>, vector<1x4x128xf32>
    %59 = vector.shape_cast %58 : vector<1x4x128xf32> to vector<4x128xf32>
    %60 = vector.shape_cast %57 : vector<4x128xf32> to vector<1x4x128xf32>
    tpu.vector_store %arg7[%c3_46, %c0_47, %c0_48], %60 {strides = array<i32>} : memref<8x4x128xf32, #tpu.memory_space<vmem>>, vector<1x4x128xf32>,
    %c4 = arith.constant 4 : index
    %c0_49 = arith.constant 0 : index
    %c0_50 = arith.constant 0 : index
    %61 = vector.load %arg1[%c4, %c0_49, %c0_50] : memref<8x33x128xbf16, #tpu.memory_space<vmem>>, vector<1x33x128xbf16>
    %62 = vector.shape_cast %61 : vector<1x33x128xbf16> to vector<33x128xbf16>
    %cst_51 = arith.constant dense<0.000000e+00> : vector<68x128xf32>
    %63 = tpu.matmul %0, %62, %cst_51 {dimension_numbers = #tpu.dot_dimension_numbers<[1], [0], [0], [1], [0, 0, 1, 1], [], []>} : vector<68x33xbf16>, vector<33x128xbf16>, vector<68x128xf32> -> vector<68x128xf32>
    %64 = vector.extract_strided_slice %63 {offsets = [0, 0], sizes = [32, 128], strides = [1, 1]} : vector<68x128xf32> to vector<32x128xf32>
    %c4_52 = arith.constant 4 : index
    %c0_53 = arith.constant 0 : index
    %c0_54 = arith.constant 0 : index
    %65 = vector.load %arg5[%c4_52, %c0_53, %c0_54] : memref<8x32x128xf32, #tpu.memory_space<vmem>>, vector<1x32x128xf32>
    %66 = vector.shape_cast %65 : vector<1x32x128xf32> to vector<32x128xf32>
    %67 = vector.shape_cast %64 : vector<32x128xf32> to vector<1x32x128xf32>
    tpu.vector_store %arg5[%c4_52, %c0_53, %c0_54], %67 {strides = array<i32>} : memref<8x32x128xf32, #tpu.memory_space<vmem>>, vector<1x32x128xf32>,
    %68 = vector.extract_strided_slice %63 {offsets = [32, 0], sizes = [32, 128], strides = [1, 1]} : vector<68x128xf32> to vector<32x128xf32>
    %c4_55 = arith.constant 4 : index
    %c0_56 = arith.constant 0 : index
    %c0_57 = arith.constant 0 : index
    %69 = vector.load %arg6[%c4_55, %c0_56, %c0_57] : memref<8x32x128xf32, #tpu.memory_space<vmem>>, vector<1x32x128xf32>
    %70 = vector.shape_cast %69 : vector<1x32x128xf32> to vector<32x128xf32>
    %71 = vector.shape_cast %68 : vector<32x128xf32> to vector<1x32x128xf32>
    tpu.vector_store %arg6[%c4_55, %c0_56, %c0_57], %71 {strides = array<i32>} : memref<8x32x128xf32, #tpu.memory_space<vmem>>, vector<1x32x128xf32>,
    %72 = vector.extract_strided_slice %63 {offsets = [64, 0], sizes = [4, 128], strides = [1, 1]} : vector<68x128xf32> to vector<4x128xf32>
    %c4_58 = arith.constant 4 : index
    %c0_59 = arith.constant 0 : index
    %c0_60 = arith.constant 0 : index
    %73 = vector.load %arg7[%c4_58, %c0_59, %c0_60] : memref<8x4x128xf32, #tpu.memory_space<vmem>>, vector<1x4x128xf32>
    %74 = vector.shape_cast %73 : vector<1x4x128xf32> to vector<4x128xf32>
    %75 = vector.shape_cast %72 : vector<4x128xf32> to vector<1x4x128xf32>
    tpu.vector_store %arg7[%c4_58, %c0_59, %c0_60], %75 {strides = array<i32>} : memref<8x4x128xf32, #tpu.memory_space<vmem>>, vector<1x4x128xf32>,
    %c5 = arith.constant 5 : index
    %c0_61 = arith.constant 0 : index
    %c0_62 = arith.constant 0 : index
    %76 = vector.load %arg1[%c5, %c0_61, %c0_62] : memref<8x33x128xbf16, #tpu.memory_space<vmem>>, vector<1x33x128xbf16>
    %77 = vector.shape_cast %76 : vector<1x33x128xbf16> to vector<33x128xbf16>
    %cst_63 = arith.constant dense<0.000000e+00> : vector<68x128xf32>
    %78 = tpu.matmul %0, %77, %cst_63 {dimension_numbers = #tpu.dot_dimension_numbers<[1], [0], [0], [1], [0, 0, 1, 1], [], []>} : vector<68x33xbf16>, vector<33x128xbf16>, vector<68x128xf32> -> vector<68x128xf32>
    %79 = vector.extract_strided_slice %78 {offsets = [0, 0], sizes = [32, 128], strides = [1, 1]} : vector<68x128xf32> to vector<32x128xf32>
    %c5_64 = arith.constant 5 : index
    %c0_65 = arith.constant 0 : index
    %c0_66 = arith.constant 0 : index
    %80 = vector.load %arg5[%c5_64, %c0_65, %c0_66] : memref<8x32x128xf32, #tpu.memory_space<vmem>>, vector<1x32x128xf32>
    %81 = vector.shape_cast %80 : vector<1x32x128xf32> to vector<32x128xf32>
    %82 = vector.shape_cast %79 : vector<32x128xf32> to vector<1x32x128xf32>
    tpu.vector_store %arg5[%c5_64, %c0_65, %c0_66], %82 {strides = array<i32>} : memref<8x32x128xf32, #tpu.memory_space<vmem>>, vector<1x32x128xf32>,
    %83 = vector.extract_strided_slice %78 {offsets = [32, 0], sizes = [32, 128], strides = [1, 1]} : vector<68x128xf32> to vector<32x128xf32>
    %c5_67 = arith.constant 5 : index
    %c0_68 = arith.constant 0 : index
    %c0_69 = arith.constant 0 : index
    %84 = vector.load %arg6[%c5_67, %c0_68, %c0_69] : memref<8x32x128xf32, #tpu.memory_space<vmem>>, vector<1x32x128xf32>
    %85 = vector.shape_cast %84 : vector<1x32x128xf32> to vector<32x128xf32>
    %86 = vector.shape_cast %83 : vector<32x128xf32> to vector<1x32x128xf32>
    tpu.vector_store %arg6[%c5_67, %c0_68, %c0_69], %86 {strides = array<i32>} : memref<8x32x128xf32, #tpu.memory_space<vmem>>, vector<1x32x128xf32>,
    %87 = vector.extract_strided_slice %78 {offsets = [64, 0], sizes = [4, 128], strides = [1, 1]} : vector<68x128xf32> to vector<4x128xf32>
    %c5_70 = arith.constant 5 : index
    %c0_71 = arith.constant 0 : index
    %c0_72 = arith.constant 0 : index
    %88 = vector.load %arg7[%c5_70, %c0_71, %c0_72] : memref<8x4x128xf32, #tpu.memory_space<vmem>>, vector<1x4x128xf32>
    %89 = vector.shape_cast %88 : vector<1x4x128xf32> to vector<4x128xf32>
    %90 = vector.shape_cast %87 : vector<4x128xf32> to vector<1x4x128xf32>
    tpu.vector_store %arg7[%c5_70, %c0_71, %c0_72], %90 {strides = array<i32>} : memref<8x4x128xf32, #tpu.memory_space<vmem>>, vector<1x4x128xf32>,
    %c6 = arith.constant 6 : index
    %c0_73 = arith.constant 0 : index
    %c0_74 = arith.constant 0 : index
    %91 = vector.load %arg1[%c6, %c0_73, %c0_74] : memref<8x33x128xbf16, #tpu.memory_space<vmem>>, vector<1x33x128xbf16>
    %92 = vector.shape_cast %91 : vector<1x33x128xbf16> to vector<33x128xbf16>
    %cst_75 = arith.constant dense<0.000000e+00> : vector<68x128xf32>
    %93 = tpu.matmul %0, %92, %cst_75 {dimension_numbers = #tpu.dot_dimension_numbers<[1], [0], [0], [1], [0, 0, 1, 1], [], []>} : vector<68x33xbf16>, vector<33x128xbf16>, vector<68x128xf32> -> vector<68x128xf32>
    %94 = vector.extract_strided_slice %93 {offsets = [0, 0], sizes = [32, 128], strides = [1, 1]} : vector<68x128xf32> to vector<32x128xf32>
    %c6_76 = arith.constant 6 : index
    %c0_77 = arith.constant 0 : index
    %c0_78 = arith.constant 0 : index
    %95 = vector.load %arg5[%c6_76, %c0_77, %c0_78] : memref<8x32x128xf32, #tpu.memory_space<vmem>>, vector<1x32x128xf32>
    %96 = vector.shape_cast %95 : vector<1x32x128xf32> to vector<32x128xf32>
    %97 = vector.shape_cast %94 : vector<32x128xf32> to vector<1x32x128xf32>
    tpu.vector_store %arg5[%c6_76, %c0_77, %c0_78], %97 {strides = array<i32>} : memref<8x32x128xf32, #tpu.memory_space<vmem>>, vector<1x32x128xf32>,
    %98 = vector.extract_strided_slice %93 {offsets = [32, 0], sizes = [32, 128], strides = [1, 1]} : vector<68x128xf32> to vector<32x128xf32>
    %c6_79 = arith.constant 6 : index
    %c0_80 = arith.constant 0 : index
    %c0_81 = arith.constant 0 : index
    %99 = vector.load %arg6[%c6_79, %c0_80, %c0_81] : memref<8x32x128xf32, #tpu.memory_space<vmem>>, vector<1x32x128xf32>
    %100 = vector.shape_cast %99 : vector<1x32x128xf32> to vector<32x128xf32>
    %101 = vector.shape_cast %98 : vector<32x128xf32> to vector<1x32x128xf32>
    tpu.vector_store %arg6[%c6_79, %c0_80, %c0_81], %101 {strides = array<i32>} : memref<8x32x128xf32, #tpu.memory_space<vmem>>, vector<1x32x128xf32>,
    %102 = vector.extract_strided_slice %93 {offsets = [64, 0], sizes = [4, 128], strides = [1, 1]} : vector<68x128xf32> to vector<4x128xf32>
    %c6_82 = arith.constant 6 : index
    %c0_83 = arith.constant 0 : index
    %c0_84 = arith.constant 0 : index
    %103 = vector.load %arg7[%c6_82, %c0_83, %c0_84] : memref<8x4x128xf32, #tpu.memory_space<vmem>>, vector<1x4x128xf32>
    %104 = vector.shape_cast %103 : vector<1x4x128xf32> to vector<4x128xf32>
    %105 = vector.shape_cast %102 : vector<4x128xf32> to vector<1x4x128xf32>
    tpu.vector_store %arg7[%c6_82, %c0_83, %c0_84], %105 {strides = array<i32>} : memref<8x4x128xf32, #tpu.memory_space<vmem>>, vector<1x4x128xf32>,
    %c7 = arith.constant 7 : index
    %c0_85 = arith.constant 0 : index
    %c0_86 = arith.constant 0 : index
    %106 = vector.load %arg1[%c7, %c0_85, %c0_86] : memref<8x33x128xbf16, #tpu.memory_space<vmem>>, vector<1x33x128xbf16>
    %107 = vector.shape_cast %106 : vector<1x33x128xbf16> to vector<33x128xbf16>
    %cst_87 = arith.constant dense<0.000000e+00> : vector<68x128xf32>
    %108 = tpu.matmul %0, %107, %cst_87 {dimension_numbers = #tpu.dot_dimension_numbers<[1], [0], [0], [1], [0, 0, 1, 1], [], []>} : vector<68x33xbf16>, vector<33x128xbf16>, vector<68x128xf32> -> vector<68x128xf32>
    %109 = vector.extract_strided_slice %108 {offsets = [0, 0], sizes = [32, 128], strides = [1, 1]} : vector<68x128xf32> to vector<32x128xf32>
    %c7_88 = arith.constant 7 : index
    %c0_89 = arith.constant 0 : index
    %c0_90 = arith.constant 0 : index
    %110 = vector.load %arg5[%c7_88, %c0_89, %c0_90] : memref<8x32x128xf32, #tpu.memory_space<vmem>>, vector<1x32x128xf32>
    %111 = vector.shape_cast %110 : vector<1x32x128xf32> to vector<32x128xf32>
    %112 = vector.shape_cast %109 : vector<32x128xf32> to vector<1x32x128xf32>
    tpu.vector_store %arg5[%c7_88, %c0_89, %c0_90], %112 {strides = array<i32>} : memref<8x32x128xf32, #tpu.memory_space<vmem>>, vector<1x32x128xf32>,
    %113 = vector.extract_strided_slice %108 {offsets = [32, 0], sizes = [32, 128], strides = [1, 1]} : vector<68x128xf32> to vector<32x128xf32>
    %c7_91 = arith.constant 7 : index
    %c0_92 = arith.constant 0 : index
    %c0_93 = arith.constant 0 : index
    %114 = vector.load %arg6[%c7_91, %c0_92, %c0_93] : memref<8x32x128xf32, #tpu.memory_space<vmem>>, vector<1x32x128xf32>
    %115 = vector.shape_cast %114 : vector<1x32x128xf32> to vector<32x128xf32>
    %116 = vector.shape_cast %113 : vector<32x128xf32> to vector<1x32x128xf32>
    tpu.vector_store %arg6[%c7_91, %c0_92, %c0_93], %116 {strides = array<i32>} : memref<8x32x128xf32, #tpu.memory_space<vmem>>, vector<1x32x128xf32>,
    %117 = vector.extract_strided_slice %108 {offsets = [64, 0], sizes = [4, 128], strides = [1, 1]} : vector<68x128xf32> to vector<4x128xf32>
    %c7_94 = arith.constant 7 : index
    %c0_95 = arith.constant 0 : index
    %c0_96 = arith.constant 0 : index
    %118 = vector.load %arg7[%c7_94, %c0_95, %c0_96] : memref<8x4x128xf32, #tpu.memory_space<vmem>>, vector<1x4x128xf32>
    %119 = vector.shape_cast %118 : vector<1x4x128xf32> to vector<4x128xf32>
    %120 = vector.shape_cast %117 : vector<4x128xf32> to vector<1x4x128xf32>
    tpu.vector_store %arg7[%c7_94, %c0_95, %c0_96], %120 {strides = array<i32>} : memref<8x4x128xf32, #tpu.memory_space<vmem>>, vector<1x4x128xf32>,
    %cst_97 = arith.constant 0xFF800000 : f32
    %121 = vector.broadcast %cst_97 : f32 to vector<4x128xf32>
    %c0_98 = arith.constant 0 : index
    %c0_99 = arith.constant 0 : index
    %122 = vector.load %arg8[%c0_98, %c0_99] : memref<4x128xf32, #tpu.memory_space<vmem>>, vector<4x128xf32>
    tpu.vector_store %arg8[%c0_98, %c0_99], %121 {strides = array<i32>} : memref<4x128xf32, #tpu.memory_space<vmem>>, vector<4x128xf32>,
    %c0_i32 = arith.constant 0 : i32
    %c8_i32 = arith.constant 8 : i32
    %123 = arith.addi %c0_i32, %c8_i32 : i32
    %c1_i32 = arith.constant 1 : i32
    scf.for %arg9 = %c0_i32 to %123 step %c1_i32  : i32 {
      %130 = arith.index_cast %arg9 : i32 to index
      %c0_107 = arith.constant 0 : index
      %c0_108 = arith.constant 0 : index
      %131 = vector.load %arg5[%130, %c0_107, %c0_108] : memref<8x32x128xf32, #tpu.memory_space<vmem>>, vector<1x32x128xf32>
      %132 = vector.shape_cast %131 : vector<1x32x128xf32> to vector<32x128xf32>
      %c0_109 = arith.constant 0 : index
      %c0_110 = arith.constant 0 : index
      %c0_111 = arith.constant 0 : index
      %133 = vector.load %arg6[%c0_109, %c0_110, %c0_111] : memref<8x32x128xf32, #tpu.memory_space<vmem>>, vector<8x32x128xf32>
      %134 = vector.shape_cast %132 : vector<32x128xf32> to vector<1x32x128xf32>
      %135 = vector.broadcast %134 : vector<1x32x128xf32> to vector<8x32x128xf32>
      %136 = arith.mulf %133, %135 : vector<8x32x128xf32>
      %cst_112 = arith.constant dense<0.000000e+00> : vector<8x128xf32>
      %137 = vector.multi_reduction <add>, %136, %cst_112 [1] : vector<8x32x128xf32> to vector<8x128xf32>
      %cst_113 = arith.constant dense<0xFF800000> : vector<128xf32>
      %138 = vector.multi_reduction <maximumf>, %137, %cst_113 [0] : vector<8x128xf32> to vector<128xf32>
      %139 = vector.shape_cast %138 : vector<128xf32> to vector<1x128xf32>
      %140 = vector.broadcast %139 : vector<1x128xf32> to vector<8x128xf32>
      %141 = arith.subf %137, %140 : vector<8x128xf32>
      %142 = math.exp %141 : vector<8x128xf32>
      %cst_114 = arith.constant dense<0.000000e+00> : vector<128xf32>
      %143 = vector.multi_reduction <add>, %142, %cst_114 [0] : vector<8x128xf32> to vector<128xf32>
      %144 = vector.shape_cast %143 : vector<128xf32> to vector<1x128xf32>
      %145 = tpu.reciprocal %144 {approx = true} : vector<1x128xf32> -> vector<1x128xf32>
      %c0_115 = arith.constant 0 : index
      %c0_116 = arith.constant 0 : index
      %c0_117 = arith.constant 0 : index
      %146 = vector.load %arg7[%c0_115, %c0_116, %c0_117] : memref<8x4x128xf32, #tpu.memory_space<vmem>>, vector<8x4x128xf32>
      %147 = vector.shape_cast %142 : vector<8x128xf32> to vector<8x1x128xf32>
      %148 = vector.broadcast %147 : vector<8x1x128xf32> to vector<8x4x128xf32>
      %149 = arith.mulf %148, %146 : vector<8x4x128xf32>
      %cst_118 = arith.constant dense<0.000000e+00> : vector<4x128xf32>
      %150 = vector.multi_reduction <add>, %149, %cst_118 [0] : vector<8x4x128xf32> to vector<4x128xf32>
      %151 = vector.broadcast %145 : vector<1x128xf32> to vector<4x128xf32>
      %152 = arith.mulf %150, %151 : vector<4x128xf32>
      %c0_119 = arith.constant 0 : index
      %c0_120 = arith.constant 0 : index
      %153 = vector.load %arg8[%c0_119, %c0_120] : memref<4x128xf32, #tpu.memory_space<vmem>>, vector<4x128xf32>
      %154 = arith.maximumf %153, %152 : vector<4x128xf32>
      %c0_121 = arith.constant 0 : index
      %c0_122 = arith.constant 0 : index
      %155 = vector.load %arg8[%c0_121, %c0_122] : memref<4x128xf32, #tpu.memory_space<vmem>>, vector<4x128xf32>
      tpu.vector_store %arg8[%c0_121, %c0_122], %154 {strides = array<i32>} : memref<4x128xf32, #tpu.memory_space<vmem>>, vector<4x128xf32>,
    }
    %c8_i32_100 = arith.constant 8 : i32
    %c0_101 = arith.constant 0 : index
    %c0_102 = arith.constant 0 : index
    %124 = vector.load %arg3[%c0_101, %c0_102] : memref<4x1xf32, #tpu.memory_space<vmem>>, vector<4x1xf32>
    %125 = vector.shape_cast %124 : vector<4x1xf32> to vector<4x1xf32>
    %126 = vector.broadcast %125 : vector<4x1xf32> to vector<4x128xf32>
    %c0_103 = arith.constant 0 : index
    %c0_104 = arith.constant 0 : index
    %127 = vector.load %arg8[%c0_103, %c0_104] : memref<4x128xf32, #tpu.memory_space<vmem>>, vector<4x128xf32>
    %128 = arith.addf %127, %126 : vector<4x128xf32>
    %c0_105 = arith.constant 0 : index
    %c0_106 = arith.constant 0 : index
    %129 = vector.load %arg4[%c0_105, %c0_106] : memref<4x128xf32, #tpu.memory_space<vmem>>, vector<4x128xf32>
    tpu.vector_store %arg4[%c0_105, %c0_106], %128 {strides = array<i32>} : memref<4x128xf32, #tpu.memory_space<vmem>>, vector<4x128xf32>,
    return
  }
  func.func @transform_0(%arg0: i32) -> (i32, i32, i32) {
    %c0_i32 = arith.constant 0 : i32
    %c0_i32_0 = arith.constant 0 : i32
    %c0_i32_1 = arith.constant 0 : i32
    return %c0_i32, %c0_i32_0, %arg0 : i32, i32, i32
  }
  func.func @transform_1(%arg0: i32) -> (i32, i32) {
    %c0_i32 = arith.constant 0 : i32
    %c0_i32_0 = arith.constant 0 : i32
    %c0_i32_1 = arith.constant 0 : i32
    return %c0_i32, %c0_i32_0 : i32, i32
  }
  func.func @transform_2(%arg0: i32) -> (i32, i32) {
    %c0_i32 = arith.constant 0 : i32
    %c0_i32_0 = arith.constant 0 : i32
    %c0_i32_1 = arith.constant 0 : i32
    return %c0_i32, %c0_i32_0 : i32, i32
  }
  func.func @transform_3(%arg0: i32) -> (i32, i32) {
    %c0_i32 = arith.constant 0 : i32
    %c0_i32_0 = arith.constant 0 : i32
    return %c0_i32, %arg0 : i32, i32
  }
}

</mosaic_0001>

<llo_original>
// kernel: tpu_custom_call.1
$region0: #{tpu_custom_call.1}
  #allocation0 [shape = 'u32[]', space=smem, size = 0x4, offset = 0x4, fixed_abs, tag = 'smem constant byte address 0x4 - core index']
  #allocation1 [shape = 'u32[144,128]{1,0:T(1,128)}', space=vmem, size = 0x12000, scoped, tag = 'internal scratch']
  #allocation2 [shape = 'f32[8,32,128]{2,1,0:T(8,128)}', space=vmem, size = 0x20000, scoped, tag = 'scratch operand']
  #allocation3 [shape = 'f32[8,32,128]{2,1,0:T(8,128)}', space=vmem, size = 0x20000, scoped, tag = 'scratch operand']
  #allocation4 [shape = 'f32[8,4,128]{2,1,0:T(4,128)}', space=vmem, size = 0x4000, scoped, tag = 'scratch operand']
  #allocation5 [shape = 'f32[4,128]{1,0:T(4,128)}', space=vmem, size = 0x800, scoped, tag = 'scratch operand']
  %s0 = inlined_call_operand.vmem [shape: bf16[8,33,256], index: 0, kind: input, shape index: {}]
  %s1 = inlined_call_operand.vmem [shape: bf16[68,33], index: 1, kind: input, shape index: {}]
  %s2 = inlined_call_operand.vmem [shape: f32[4,1], index: 2, kind: input, shape index: {}]
  %s3 = inlined_call_operand.hbm [shape: f32[4,256], index: 3, kind: output, shape index: {}]
  %s4 = sld [smem:[#allocation0]]
  $region93: #{tpu_custom_call.1} parent=0
    _
  %s6 = ssub.s32 1, %s4
  %s7 = scalar_select 0, %s6, %s4
  $region1: #{tpu_custom_call.1} parent=0
    #allocation6 [shape = 'u8[163840]{0}', space=vmem, size = 0x28000, scoped, tag = 'input window, operand 0']
    #allocation7 [shape = 'u8[4096]{0}', space=vmem, size = 0x1000, scoped, tag = 'output window, operand 0']
    #allocation8 [shape = 's32[2]{0}', space=sflag, size = 0x8, scoped, tag = 'scoped memory for tpu_custom_call.1']
    %8 = vsyncpa [#allocation8], 0
    %s9 = scalar_lea.sflag [#allocation8], 1
    %10 = vsyncpa %s9, 0
    loop: start=0, step=1, limit=4
    $region2: #{tpu_custom_call.1} parent=1 // loop_pre_header
      _
    $region3: #{tpu_custom_call.1} parent=1 // loop_header
      %s12 = sphi 0, %s16
      %p13 = scmp.ge.s32.totalorder %s12, 4
      %s22 = sphi 0, %s24
      %s25 = sphi 0, %s22
      %s26 = sphi 0, %s25
      %s42 = sphi 0, %s26
      %s46 = sphi 0, %s46
      %s48 = sphi 0, %s46
      %s49 = sphi 0, %s48
      %s63 = sphi 0, %s49
      %s67 = sphi 0, %s67
      %s69 = sphi 0, %s67
      %s70 = sphi 0, %s69
      %s84 = sphi 0, %s70
      %s90 = sphi 0, %s92
      %s93 = sphi 0, %s90
      %s94 = sphi 0, %s93
      %s110 = sphi 0, %s94
    $region4: #{tpu_custom_call.1} parent=1 // loop_header_branch
      %15 = sbr.rel (%p13) target = $region8
    $region5: #{tpu_custom_call.1} parent=1 // loop_body
      %s17 = ssub.s32 %s12, 1
      %s18 = ssub.s32 %s12, 2
      %s19 = sadd.s32 %s12, 1
      %s20 = ssub.s32 %s12, %s19
      %p21 = scmp.eq.s32.totalorder %s20, 0
      %s23 = sadd.s32 %s22, 1
      %s24 = scalar_select %p21, %s22, %s23
      %p27 = pneg %p21
      %p28 = scmp.eq.s32.totalorder %s12, 1
      %p29 = por %p27, %p28
      %p30 = scmp.ne.s32.totalorder %s22, %s25
      %p31 = scmp.eq.s32.totalorder %s12, 0
      %p32 = por %p30, %p31
      %p33 = scmp.ne.s32.totalorder %s22, %s25
      %p34 = scmp.eq.s32.totalorder %s17, 1
      %p35 = por %p33, %p34
      %p36 = scmp.ne.s32.totalorder %s25, %s26
      %p37 = scmp.eq.s32.totalorder %s17, 0
      %p38 = por %p36, %p37
      %p39 = scmp.ne.s32.totalorder %s25, %s26
      %p40 = scmp.eq.s32.totalorder %s18, 1
      %p41 = por %p39, %p40
      %p43 = scmp.ne.s32.totalorder %s26, %s42
      %p44 = scmp.eq.s32.totalorder %s18, 0
      %p45 = por %p43, %p44
      %s47 = sadd.s32 %s46, 1
      %p50 = scmp.eq.s32.totalorder %s12, 1
      %p51 = scmp.ne.s32.totalorder %s46, %s48
      %p52 = scmp.eq.s32.totalorder %s12, 0
      %p53 = por %p51, %p52
      %p54 = scmp.ne.s32.totalorder %s46, %s48
      %p55 = scmp.eq.s32.totalorder %s17, 1
      %p56 = por %p54, %p55
      %p57 = scmp.ne.s32.totalorder %s48, %s49
      %p58 = scmp.eq.s32.totalorder %s17, 0
      %p59 = por %p57, %p58
      %p60 = scmp.ne.s32.totalorder %s48, %s49
      %p61 = scmp.eq.s32.totalorder %s18, 1
      %p62 = por %p60, %p61
      %p64 = scmp.ne.s32.totalorder %s49, %s63
      %p65 = scmp.eq.s32.totalorder %s18, 0
      %p66 = por %p64, %p65
      %s68 = sadd.s32 %s67, 1
      %p71 = scmp.eq.s32.totalorder %s12, 1
      %p72 = scmp.ne.s32.totalorder %s67, %s69
      %p73 = scmp.eq.s32.totalorder %s12, 0
      %p74 = por %p72, %p73
      %p75 = scmp.ne.s32.totalorder %s67, %s69
      %p76 = scmp.eq.s32.totalorder %s17, 1
      %p77 = por %p75, %p76
      %p78 = scmp.ne.s32.totalorder %s69, %s70
      %p79 = scmp.eq.s32.totalorder %s17, 0
      %p80 = por %p78, %p79
      %p81 = scmp.ne.s32.totalorder %s69, %s70
      %p82 = scmp.eq.s32.totalorder %s18, 1
      %p83 = por %p81, %p82
      %p85 = scmp.ne.s32.totalorder %s70, %s84
      %p86 = scmp.eq.s32.totalorder %s18, 0
      %p87 = por %p85, %p86
      %s88 = ssub.s32 %s12, %s19
      %p89 = scmp.eq.s32.totalorder %s88, 0
      %s91 = sadd.s32 %s90, 1
      %s92 = scalar_select %p89, %s90, %s91
      %p95 = pneg %p89
      %p96 = scmp.eq.s32.totalorder %s12, 1
      %p97 = por %p95, %p96
      %p98 = scmp.ne.s32.totalorder %s90, %s93
      %p99 = scmp.eq.s32.totalorder %s12, 0
      %p100 = por %p98, %p99
      %p101 = scmp.ne.s32.totalorder %s90, %s93
      %p102 = scmp.eq.s32.totalorder %s17, 1
      %p103 = por %p101, %p102
      %p104 = scmp.ne.s32.totalorder %s93, %s94
      %p105 = scmp.eq.s32.totalorder %s17, 0
      %p106 = por %p104, %p105
      %p107 = scmp.ne.s32.totalorder %s93, %s94
      %p108 = scmp.eq.s32.totalorder %s18, 1
      %p109 = por %p107, %p108
      %p111 = scmp.ne.s32.totalorder %s94, %s110
      %p112 = scmp.eq.s32.totalorder %s18, 0
      %p113 = por %p111, %p112
      %p114 = scmp.le.s32.totalorder 1, %s12
      %p115 = scmp.lt.s32.totalorder %s12, 3
      %p116 = pnand %p114, %p115
      %p117 = pneg %p116
      // Predicated region
      $region9: #{tpu_custom_call.1} parent=5 // pred_check
        _
      $region10: #{tpu_custom_call.1} parent=5 // pred_check_branch
        %119 = sbr.rel (%p116) target = $region12
      $region11: #{tpu_custom_call.1} parent=5 // pred_region
        %s120 = ssub.s32 %s12, 1
        // Predicated region
        $region13: #{tpu_custom_call.1} parent=11 // pred_check
          %p121 = pneg %p59
        $region14: #{tpu_custom_call.1} parent=11 // pred_check_branch
          %123 = sbr.rel (%p121) target = $region16
        $region15: #{tpu_custom_call.1} parent=11 // pred_region
          _
        $region16: #{tpu_custom_call.1} parent=11 // pred_fallthru
          _
        // Predicated region
        $region17: #{tpu_custom_call.1} parent=11 // pred_check
          %p124 = pneg %p80
        $region18: #{tpu_custom_call.1} parent=11 // pred_check_branch
          %126 = sbr.rel (%p124) target = $region20
        $region19: #{tpu_custom_call.1} parent=11 // pred_region
          _
        $region20: #{tpu_custom_call.1} parent=11 // pred_fallthru
          _
      $region12: #{tpu_custom_call.1} parent=5 // pred_fallthru
        _
      %p127 = scmp.lt.s32.totalorder %s12, 2
      // Predicated region
      $region21: #{tpu_custom_call.1} parent=5 // pred_check
        %p128 = pneg %p127
      $region22: #{tpu_custom_call.1} parent=5 // pred_check_branch
        %130 = sbr.rel (%p128) target = $region24
      $region23: #{tpu_custom_call.1} parent=5 // pred_region
        // Predicated region
        $region25: #{tpu_custom_call.1} parent=23 // pred_check
          %p131 = pneg %p32
        $region26: #{tpu_custom_call.1} parent=23 // pred_check_branch
          %133 = sbr.rel (%p131) target = $region28
        $region27: #{tpu_custom_call.1} parent=23 // pred_region
          %s134 = sand.u32 %s22, 1
          %s135 = sand.u32 %s22, 1
          %s136 = smul.addr %s135, 160
          %s137 = scalar_lea.vmem [#allocation6], %s136
          %s138 = smul.addr %s12, 4
          %s139 = scalar_lea.vmem %s0, %s138
          // Predicated region
          $region29: #{tpu_custom_call.1} parent=27 // pred_check
            _
          $region30: #{tpu_custom_call.1} parent=27 // pred_check_branch
            %141 = sbr.rel (0) target = $region32
          $region31: #{tpu_custom_call.1} parent=27 // pred_region
            // Predicated region
            $region33: #{tpu_custom_call.1} parent=31 // pred_check
              _
            $region34: #{tpu_custom_call.1} parent=31 // pred_check_branch
              %143 = sbr.rel target = $region36
            $region35: #{tpu_custom_call.1} parent=31 // pred_region
              // Predicated region
              $region48: #{tpu_custom_call.1} parent=35 // pred_check
                _
              $region49: #{tpu_custom_call.1} parent=35 // pred_check_branch
                %236 = sbr.rel (0) target = $region51
              $region50: #{tpu_custom_call.1} parent=35 // pred_region
                loop: start=0, step=1, limit=1
                $region52: #{tpu_custom_call.1} parent=50 // loop_pre_header
                  _
                $region53: #{tpu_custom_call.1} parent=50 // loop_header
                  %s238 = sphi 0, %s242
                  %p239 = scmp.ge.s32.totalorder %s238, 1
                  %s243 = sphi %s139, %s139
                  %s244 = sphi %s137, %s137
                $region54: #{tpu_custom_call.1} parent=50 // loop_header_branch
                  %241 = sbr.rel (%p239) target = $region58
                $region55: #{tpu_custom_call.1} parent=50 // loop_body
                  _
                $region56: #{tpu_custom_call.1} parent=50 // loop_footer
                  %s242 = sadd.s32 1, %s238
                $region57: #{tpu_custom_call.1} parent=50 // loop_footer_branch
                  %237 = sbr.rel target = $region53
                $region58: #{tpu_custom_call.1} parent=50 // loop_exit
                  _
                loop: start=0, step=1, limit=1
                $region59: #{tpu_custom_call.1} parent=50 // loop_pre_header
                  _
                $region60: #{tpu_custom_call.1} parent=50 // loop_header
                  %s247 = sphi 0, %s251
                  %p248 = scmp.ge.s32.totalorder %s247, 1
                  %s252 = sphi %s139, %s139
                  %s253 = sphi %s137, %s137
                $region61: #{tpu_custom_call.1} parent=50 // loop_header_branch
                  %250 = sbr.rel (%p248) target = $region65
                $region62: #{tpu_custom_call.1} parent=50 // loop_body
                  %v254 = vld [vmem:[%s252] sm:$0xf]
                  %255 = vst [vmem:[%s253] sm:$0xf] %v254
                  %v256 = vld [vmem:[%s252 + $0x8] sm:$0xf]
                  %257 = vst [vmem:[%s253 + $0x4] sm:$0xf] %v256
                  %v258 = vld [vmem:[%s252 + $0x10] sm:$0xf]
                  %259 = vst [vmem:[%s253 + $0x8] sm:$0xf] %v258
                  %v260 = vld [vmem:[%s252 + $0x18] sm:$0xf]
                  %261 = vst [vmem:[%s253 + $0xc] sm:$0xf] %v260
                  %v262 = vld [vmem:[%s252 + $0x20] sm:$0xf]
                  %263 = vst [vmem:[%s253 + $0x10] sm:$0xf] %v262
                  %v264 = vld [vmem:[%s252 + $0x28] sm:$0xf]
                  %265 = vst [vmem:[%s253 + $0x14] sm:$0xf] %v264
                  %v266 = vld [vmem:[%s252 + $0x30] sm:$0xf]
                  %267 = vst [vmem:[%s253 + $0x18] sm:$0xf] %v266
                  %v268 = vld [vmem:[%s252 + $0x38] sm:$0xf]
                  %269 = vst [vmem:[%s253 + $0x1c] sm:$0xf] %v268
                  %v270 = vld [vmem:[%s252 + $0x40] sm:$0xf]
                  %271 = vst [vmem:[%s253 + $0x20] sm:$0xf] %v270
                  %v272 = vld [vmem:[%s252 + $0x48] sm:$0xf]
                  %273 = vst [vmem:[%s253 + $0x24] sm:$0xf] %v272
                  %v274 = vld [vmem:[%s252 + $0x50] sm:$0xf]
                  %275 = vst [vmem:[%s253 + $0x28] sm:$0xf] %v274
                  %v276 = vld [vmem:[%s252 + $0x58] sm:$0xf]
                  %277 = vst [vmem:[%s253 + $0x2c] sm:$0xf] %v276
                  %v278 = vld [vmem:[%s252 + $0x60] sm:$0xf]
                  %279 = vst [vmem:[%s253 + $0x30] sm:$0xf] %v278
                  %v280 = vld [vmem:[%s252 + $0x68] sm:$0xf]
                  %281 = vst [vmem:[%s253 + $0x34] sm:$0xf] %v280
                  %v282 = vld [vmem:[%s252 + $0x70] sm:$0xf]
                  %283 = vst [vmem:[%s253 + $0x38] sm:$0xf] %v282
                  %v284 = vld [vmem:[%s252 + $0x78] sm:$0xf]
                  %285 = vst [vmem:[%s253 + $0x3c] sm:$0xf] %v284
                  %v286 = vld [vmem:[%s252 + $0x80] sm:$0xf]
                  %287 = vst [vmem:[%s253 + $0x40] sm:$0xf] %v286
                  %v288 = vld [vmem:[%s252 + $0x88] sm:$0xf]
                  %289 = vst [vmem:[%s253 + $0x44] sm:$0xf] %v288
                  %v290 = vld [vmem:[%s252 + $0x90] sm:$0xf]
                  %291 = vst [vmem:[%s253 + $0x48] sm:$0xf] %v290
                  %v292 = vld [vmem:[%s252 + $0x98] sm:$0xf]
                  %293 = vst [vmem:[%s253 + $0x4c] sm:$0xf] %v292
                  %v294 = vld [vmem:[%s252 + $0xa0] sm:$0xf]
                  %295 = vst [vmem:[%s253 + $0x50] sm:$0xf] %v294
                  %v296 = vld [vmem:[%s252 + $0xa8] sm:$0xf]
                  %297 = vst [vmem:[%s253 + $0x54] sm:$0xf] %v296
                  %v298 = vld [vmem:[%s252 + $0xb0] sm:$0xf]
                  %299 = vst [vmem:[%s253 + $0x58] sm:$0xf] %v298
                  %v300 = vld [vmem:[%s252 + $0xb8] sm:$0xf]
                  %301 = vst [vmem:[%s253 + $0x5c] sm:$0xf] %v300
                  %v302 = vld [vmem:[%s252 + $0xc0] sm:$0xf]
                  %303 = vst [vmem:[%s253 + $0x60] sm:$0xf] %v302
                  %v304 = vld [vmem:[%s252 + $0xc8] sm:$0xf]
                  %305 = vst [vmem:[%s253 + $0x64] sm:$0xf] %v304
                  %v306 = vld [vmem:[%s252 + $0xd0] sm:$0xf]
                  %307 = vst [vmem:[%s253 + $0x68] sm:$0xf] %v306
                  %v308 = vld [vmem:[%s252 + $0xd8] sm:$0xf]
                  %309 = vst [vmem:[%s253 + $0x6c] sm:$0xf] %v308
                  %v310 = vld [vmem:[%s252 + $0xe0] sm:$0xf]
                  %311 = vst [vmem:[%s253 + $0x70] sm:$0xf] %v310
                  %v312 = vld [vmem:[%s252 + $0xe8] sm:$0xf]
                  %313 = vst [vmem:[%s253 + $0x74] sm:$0xf] %v312
                  %v314 = vld [vmem:[%s252 + $0xf0] sm:$0xf]
                  %315 = vst [vmem:[%s253 + $0x78] sm:$0xf] %v314
                  %v316 = vld [vmem:[%s252 + $0xf8] sm:$0xf]
                  %317 = vst [vmem:[%s253 + $0x7c] sm:$0xf] %v316
                  %v318 = vld [vmem:[%s252 + $0x100] sm:$0xf]
                  %319 = vst [vmem:[%s253 + $0x80] sm:$0xf] %v318
                  %v320 = vld [vmem:[%s252 + $0x108] sm:$0xf]
                  %321 = vst [vmem:[%s253 + $0x84] sm:$0xf] %v320
                  %v322 = vld [vmem:[%s252 + $0x110] sm:$0xf]
                  %323 = vst [vmem:[%s253 + $0x88] sm:$0xf] %v322
                  %v324 = vld [vmem:[%s252 + $0x118] sm:$0xf]
                  %325 = vst [vmem:[%s253 + $0x8c] sm:$0xf] %v324
                  %v326 = vld [vmem:[%s252 + $0x120] sm:$0xf]
                  %327 = vst [vmem:[%s253 + $0x90] sm:$0xf] %v326
                  %v328 = vld [vmem:[%s252 + $0x128] sm:$0xf]
                  %329 = vst [vmem:[%s253 + $0x94] sm:$0xf] %v328
                  %v330 = vld [vmem:[%s252 + $0x130] sm:$0xf]
                  %331 = vst [vmem:[%s253 + $0x98] sm:$0xf] %v330
                  %v332 = vld [vmem:[%s252 + $0x138] sm:$0xf]
                  %333 = vst [vmem:[%s253 + $0x9c] sm:$0xf] %v332
                $region63: #{tpu_custom_call.1} parent=50 // loop_footer
                  %s251 = sadd.s32 1, %s247
                $region64: #{tpu_custom_call.1} parent=50 // loop_footer_branch
                  %246 = sbr.rel target = $region60
                $region65: #{tpu_custom_call.1} parent=50 // loop_exit
                  _
              $region51: #{tpu_custom_call.1} parent=35 // pred_fallthru
                _
            $region36: #{tpu_custom_call.1} parent=31 // pred_fallthru
              _
            // Predicated region
            $region37: #{tpu_custom_call.1} parent=31 // pred_check
              _
            $region38: #{tpu_custom_call.1} parent=31 // pred_check_branch
              %145 = sbr.rel (0) target = $region40
            $region39: #{tpu_custom_call.1} parent=31 // pred_region
              loop: start=0, step=1, limit=1
              $region41: #{tpu_custom_call.1} parent=39 // loop_pre_header
                _
              $region42: #{tpu_custom_call.1} parent=39 // loop_header
                %s148 = sphi 0, %s152
                %p149 = scmp.ge.s32.totalorder %s148, 1
                %s153 = sphi %s139, %s139
                %s154 = sphi %s137, %s137
              $region43: #{tpu_custom_call.1} parent=39 // loop_header_branch
                %151 = sbr.rel (%p149) target = $region47
              $region44: #{tpu_custom_call.1} parent=39 // loop_body
                %v155 = vld [vmem:[%s153] sm:$0xf]
                %156 = vst [vmem:[%s154] sm:$0xf] %v155
                %v157 = vld [vmem:[%s153 + $0x8] sm:$0xf]
                %158 = vst [vmem:[%s154 + $0x4] sm:$0xf] %v157
                %v159 = vld [vmem:[%s153 + $0x10] sm:$0xf]
                %160 = vst [vmem:[%s154 + $0x8] sm:$0xf] %v159
                %v161 = vld [vmem:[%s153 + $0x18] sm:$0xf]
                %162 = vst [vmem:[%s154 + $0xc] sm:$0xf] %v161
                %v163 = vld [vmem:[%s153 + $0x20] sm:$0xf]
                %164 = vst [vmem:[%s154 + $0x10] sm:$0xf] %v163
                %v165 = vld [vmem:[%s153 + $0x28] sm:$0xf]
                %166 = vst [vmem:[%s154 + $0x14] sm:$0xf] %v165
                %v167 = vld [vmem:[%s153 + $0x30] sm:$0xf]
                %168 = vst [vmem:[%s154 + $0x18] sm:$0xf] %v167
                %v169 = vld [vmem:[%s153 + $0x38] sm:$0xf]
                %170 = vst [vmem:[%s154 + $0x1c] sm:$0xf] %v169
                %v171 = vld [vmem:[%s153 + $0x40] sm:$0xf]
                %172 = vst [vmem:[%s154 + $0x20] sm:$0xf] %v171
                %v173 = vld [vmem:[%s153 + $0x48] sm:$0xf]
                %174 = vst [vmem:[%s154 + $0x24] sm:$0xf] %v173
                %v175 = vld [vmem:[%s153 + $0x50] sm:$0xf]
                %176 = vst [vmem:[%s154 + $0x28] sm:$0xf] %v175
                %v177 = vld [vmem:[%s153 + $0x58] sm:$0xf]
                %178 = vst [vmem:[%s154 + $0x2c] sm:$0xf] %v177
                %v179 = vld [vmem:[%s153 + $0x60] sm:$0xf]
                %180 = vst [vmem:[%s154 + $0x30] sm:$0xf] %v179
                %v181 = vld [vmem:[%s153 + $0x68] sm:$0xf]
                %182 = vst [vmem:[%s154 + $0x34] sm:$0xf] %v181
                %v183 = vld [vmem:[%s153 + $0x70] sm:$0xf]
                %184 = vst [vmem:[%s154 + $0x38] sm:$0xf] %v183
                %v185 = vld [vmem:[%s153 + $0x78] sm:$0xf]
                %186 = vst [vmem:[%s154 + $0x3c] sm:$0xf] %v185
                %v187 = vld [vmem:[%s153 + $0x80] sm:$0xf]
                %188 = vst [vmem:[%s154 + $0x40] sm:$0xf] %v187
                %v189 = vld [vmem:[%s153 + $0x88] sm:$0xf]
                %190 = vst [vmem:[%s154 + $0x44] sm:$0xf] %v189
                %v191 = vld [vmem:[%s153 + $0x90] sm:$0xf]
                %192 = vst [vmem:[%s154 + $0x48] sm:$0xf] %v191
                %v193 = vld [vmem:[%s153 + $0x98] sm:$0xf]
                %194 = vst [vmem:[%s154 + $0x4c] sm:$0xf] %v193
                %v195 = vld [vmem:[%s153 + $0xa0] sm:$0xf]
                %196 = vst [vmem:[%s154 + $0x50] sm:$0xf] %v195
                %v197 = vld [vmem:[%s153 + $0xa8] sm:$0xf]
                %198 = vst [vmem:[%s154 + $0x54] sm:$0xf] %v197
                %v199 = vld [vmem:[%s153 + $0xb0] sm:$0xf]
                %200 = vst [vmem:[%s154 + $0x58] sm:$0xf] %v199
                %v201 = vld [vmem:[%s153 + $0xb8] sm:$0xf]
                %202 = vst [vmem:[%s154 + $0x5c] sm:$0xf] %v201
                %v203 = vld [vmem:[%s153 + $0xc0] sm:$0xf]
                %204 = vst [vmem:[%s154 + $0x60] sm:$0xf] %v203
                %v205 = vld [vmem:[%s153 + $0xc8] sm:$0xf]
                %206 = vst [vmem:[%s154 + $0x64] sm:$0xf] %v205
                %v207 = vld [vmem:[%s153 + $0xd0] sm:$0xf]
                %208 = vst [vmem:[%s154 + $0x68] sm:$0xf] %v207
                %v209 = vld [vmem:[%s153 + $0xd8] sm:$0xf]
                %210 = vst [vmem:[%s154 + $0x6c] sm:$0xf] %v209
                %v211 = vld [vmem:[%s153 + $0xe0] sm:$0xf]
                %212 = vst [vmem:[%s154 + $0x70] sm:$0xf] %v211
                %v213 = vld [vmem:[%s153 + $0xe8] sm:$0xf]
                %214 = vst [vmem:[%s154 + $0x74] sm:$0xf] %v213
                %v215 = vld [vmem:[%s153 + $0xf0] sm:$0xf]
                %216 = vst [vmem:[%s154 + $0x78] sm:$0xf] %v215
                %v217 = vld [vmem:[%s153 + $0xf8] sm:$0xf]
                %218 = vst [vmem:[%s154 + $0x7c] sm:$0xf] %v217
                %v219 = vld [vmem:[%s153 + $0x100] sm:$0xf]
                %220 = vst [vmem:[%s154 + $0x80] sm:$0xf] %v219
                %v221 = vld [vmem:[%s153 + $0x108] sm:$0xf]
                %222 = vst [vmem:[%s154 + $0x84] sm:$0xf] %v221
                %v223 = vld [vmem:[%s153 + $0x110] sm:$0xf]
                %224 = vst [vmem:[%s154 + $0x88] sm:$0xf] %v223
                %v225 = vld [vmem:[%s153 + $0x118] sm:$0xf]
                %226 = vst [vmem:[%s154 + $0x8c] sm:$0xf] %v225
                %v227 = vld [vmem:[%s153 + $0x120] sm:$0xf]
                %228 = vst [vmem:[%s154 + $0x90] sm:$0xf] %v227
                %v229 = vld [vmem:[%s153 + $0x128] sm:$0xf]
                %230 = vst [vmem:[%s154 + $0x94] sm:$0xf] %v229
                %v231 = vld [vmem:[%s153 + $0x130] sm:$0xf]
                %232 = vst [vmem:[%s154 + $0x98] sm:$0xf] %v231
                %v233 = vld [vmem:[%s153 + $0x138] sm:$0xf]
                %234 = vst [vmem:[%s154 + $0x9c] sm:$0xf] %v233
              $region45: #{tpu_custom_call.1} parent=39 // loop_footer
                %s152 = sadd.s32 1, %s148
              $region46: #{tpu_custom_call.1} parent=39 // loop_footer_branch
                %147 = sbr.rel target = $region42
              $region47: #{tpu_custom_call.1} parent=39 // loop_exit
                _
            $region40: #{tpu_custom_call.1} parent=31 // pred_fallthru
              _
          $region32: #{tpu_custom_call.1} parent=27 // pred_fallthru
            _
          %334 = vnop
        $region28: #{tpu_custom_call.1} parent=23 // pred_fallthru
          _
      $region24: #{tpu_custom_call.1} parent=5 // pred_fallthru
        _
      %p335 = scmp.le.s32.totalorder 1, %s12
      %p336 = scmp.lt.s32.totalorder %s12, 3
      %p337 = pnand %p335, %p336
      %p338 = pneg %p337
      // Predicated region
      $region66: #{tpu_custom_call.1} parent=5 // pred_check
        _
      $region67: #{tpu_custom_call.1} parent=5 // pred_check_branch
        %340 = sbr.rel (%p337) target = $region69
      $region68: #{tpu_custom_call.1} parent=5 // pred_region
        %s341 = ssub.s32 %s12, 1
        %s342 = sand.u32 %s25, 1
        %s343 = sand.u32 %s25, 1
        %s344 = smul.addr %s343, 160
        %s345 = scalar_lea.vmem [#allocation6], %s344
        // Predicated region
        $region70: #{tpu_custom_call.1} parent=68 // pred_check
          %p346 = pneg %p38
        $region71: #{tpu_custom_call.1} parent=68 // pred_check_branch
          %348 = sbr.rel (%p346) target = $region73
        $region72: #{tpu_custom_call.1} parent=68 // pred_region
          _
        $region73: #{tpu_custom_call.1} parent=68 // pred_fallthru
          _
        %s349 = sand.u32 %s25, 1
        %s350 = sand.u32 %s25, 1
        %s351 = smul.addr %s350, 160
        %s352 = scalar_lea.vmem [#allocation6], %s351
        %p353 = pneg %p38
        %p354 = pneg %p35
        %p355 = pneg %p59
        %p356 = pneg %p56
        %p357 = pneg %p80
        %p358 = pneg %p77
        %p359 = pneg %p106
        %p360 = pneg %p103
        %s361 = sand.u32 %s93, 1
        %s362 = scalar_lea.sflag [#allocation8], %s361
        %s363 = sand.u32 %s93, 1
        %s364 = smul.addr %s363, 4
        %s365 = scalar_lea.vmem [#allocation7], %s364
        %v367 = vld [vmem:[%s1] sm:$0xf]
        %v368 = vld [vmem:[%s1 + $0x4] sm:$0xf]
        %v369 = vld [vmem:[%s1 + $0x8] sm:$0xf]
        %v370 = vld [vmem:[%s1 + $0xc] sm:$0xf]
        %v371 = vld [vmem:[%s1 + $0x10] sm:$0xf]
        %v372 = vld [vmem:[%s1 + $0x14] sm:$0xf]
        %v373 = vld [vmem:[%s1 + $0x18] sm:$0xf]
        %v374 = vld [vmem:[%s1 + $0x1c] sm:$0xf]
        %v375 = vld [vmem:[%s1 + $0x20] sm:$0x3]
        %v376 = vld [vmem:[%s345] sm:$0xf]
        %v377 = vld [vmem:[%s345 + $0x4] sm:$0xf]
        %v378 = vld [vmem:[%s345 + $0x8] sm:$0xf]
        %v379 = vld [vmem:[%s345 + $0xc] sm:$0xf]
        %v380 = vld [vmem:[%s345 + $0x10] sm:$0x1]
        %v390 = vunpack.c.l.b16 %v367
        %v391 = vunpack.c.l.b16 %v368
        %v392 = vunpack.c.l.b16 %v369
        %v393 = vunpack.c.l.b16 %v370
        %v394 = vunpack.c.l.b16 %v371
        %v395 = vunpack.c.l.b16 %v372
        %v396 = vunpack.c.l.b16 %v373
        %v397 = vunpack.c.l.b16 %v374
        %v398 = vunpack.c.l.b16 %v375
        %v399 = vpack.c.b16 %v391, %v390
        %v400 = vpack.c.b16 %v393, %v392
        %v401 = vpack.c.b16 %v395, %v394
        %v402 = vpack.c.b16 %v397, %v396
        %v403 = vpack.c.b16 %v398, %v398
        %v409 = vunpack.c.l.b16 %v376
        %v410 = vunpack.c.l.b16 %v377
        %v411 = vunpack.c.l.b16 %v378
        %v412 = vunpack.c.l.b16 %v379
        %v413 = vunpack.c.l.b16 %v380
        %v414 = vpack.c.b16 %v410, %v409
        %v415 = vpack.c.b16 %v412, %v411
        %v416 = vpack.c.b16 %v413, %v413
        %vm419 = vcmask 269312
        %v421 = vsel %vm419, %v399, 0
        %v424 = vsel %vm419, %v400, 0
        %v427 = vsel %vm419, %v401, 0
        %v430 = vsel %vm419, %v402, 0
        %v433 = vsel %vm419, %v403, 0
        %vm435 = vcmask 1040384
        %v436 = vsel 0, 4294967295, 65535
        %v437 = vsel %vm435, %v436, 0
        %v439 = vand.u32 %v416, %v437
        %441 = vmatprep.subr.bf16.mxu0 0
        %442 = vmatpush1.bf16.msra.mxu0 %v414
        %443 = vmatprep.subr.bf16.mxu0 0
        %444 = vmatpush1.bf16.msra.mxu0 %v415
        %445 = vmatprep.subr.bf16.mxu0 0
        %446 = vmatpush1.bf16.msra.mxu0 %v439
        %447 = vmatprep.subr.bf16.mxu0 0
        %448 = vmatpush1.bf16.msra.mxu0 0
        %449 = vmatprep.subr.bf16.mxu0 0
        %450 = vmatpush1.bf16.msra.mxu0 0
        %451 = vmatprep.subr.bf16.mxu0 0
        %452 = vmatpush1.bf16.msra.mxu0 0
        %453 = vmatprep.subr.bf16.mxu0 0
        %454 = vmatpush1.bf16.msra.mxu0 0
        %455 = vmatprep.subr.bf16.mxu0 0
        %456 = vmatpush1.bf16.msra.mxu0 0
        %457 = vmatprep.subr.bf16.mxu0 0
        %458 = vmatpush1.bf16.msra.mxu0 0
        %459 = vmatprep.subr.bf16.mxu0 0
        %460 = vmatpush1.bf16.msra.mxu0 0
        %461 = vmatprep.subr.bf16.mxu0 0
        %462 = vmatpush1.bf16.msra.mxu0 0
        %463 = vmatprep.subr.bf16.mxu0 0
        %464 = vmatpush1.bf16.msra.mxu0 0
        %465 = vmatprep.subr.bf16.mxu0 0
        %466 = vmatpush1.bf16.msra.mxu0 0
        %467 = vmatprep.subr.bf16.mxu0 0
        %468 = vmatpush1.bf16.msra.mxu0 0
        %469 = vmatprep.subr.bf16.mxu0 0
        %470 = vmatpush1.bf16.msra.mxu0 0
        %471 = vmatprep.subr.bf16.mxu0 0
        %472 = vmatpush1.bf16.msra.mxu0 0
        %473 = vmatprep.mubr.bf16.mxu0 0
        %474 = vmatmul.mubr.bf16.gmra.mrb[0].mxu0 %v421
        %v475 = vpop.f32.mrb[0].mxu0
        %v476 = vadd.f32 0.0, %v475
        %v477 = vpop.f32.mrb[0].mxu0
        %v478 = vpop.f32.mrb[0].mxu0
        %v479 = vadd.f32 0.0, %v478
        %v480 = vpop.f32.mrb[0].mxu0
        %481 = vmatprep.mubr.bf16.mxu0 0
        %482 = vmatmul.mubr.bf16.gmra.mrb[0].mxu0 %v424
        %v483 = vpop.f32.mrb[0].mxu0
        %v484 = vadd.f32 0.0, %v483
        %v485 = vpop.f32.mrb[0].mxu0
        %v486 = vpop.f32.mrb[0].mxu0
        %v487 = vadd.f32 0.0, %v486
        %v488 = vpop.f32.mrb[0].mxu0
        %489 = vmatprep.mubr.bf16.mxu0 0
        %490 = vmatmul.mubr.bf16.gmra.mrb[0].mxu0 %v427
        %v491 = vpop.f32.mrb[0].mxu0
        %v492 = vadd.f32 0.0, %v491
        %v493 = vpop.f32.mrb[0].mxu0
        %v494 = vpop.f32.mrb[0].mxu0
        %v495 = vadd.f32 0.0, %v494
        %v496 = vpop.f32.mrb[0].mxu0
        %497 = vmatprep.mubr.bf16.mxu0 0
        %498 = vmatmul.mubr.bf16.gmra.mrb[0].mxu0 %v430
        %v499 = vpop.f32.mrb[0].mxu0
        %v500 = vadd.f32 0.0, %v499
        %v501 = vpop.f32.mrb[0].mxu0
        %v502 = vpop.f32.mrb[0].mxu0
        %v503 = vadd.f32 0.0, %v502
        %v504 = vpop.f32.mrb[0].mxu0
        %505 = vmatprep.mubr.bf16.mxu0 0
        %506 = vmatmul.mubr.bf16.gmra.mrb[0].mxu0 %v433
        %v507 = vpop.f32.mrb[0].mxu0
        %v508 = vadd.f32 0.0, %v507
        %v509 = vpop.f32.mrb[0].mxu0
        %v510 = vpop.f32.mrb[0].mxu0
        %v511 = vpop.f32.mrb[0].mxu0
        %512 = vdwg.mxu0
        %513 = vst [vmem:[#allocation2] sm:$0xff] %v476
        %514 = vst [vmem:[#allocation2 + $0x8] sm:$0xff] %v479
        %515 = vst [vmem:[#allocation2 + $0x10] sm:$0xff] %v484
        %516 = vst [vmem:[#allocation2 + $0x18] sm:$0xff] %v487
        %517 = vst [vmem:[#allocation3] sm:$0xff] %v492
        %518 = vst [vmem:[#allocation3 + $0x8] sm:$0xff] %v495
        %519 = vst [vmem:[#allocation3 + $0x10] sm:$0xff] %v500
        %520 = vst [vmem:[#allocation3 + $0x18] sm:$0xff] %v503
        %521 = vst [vmem:[#allocation4] sm:$0xf] %v508
        %s522 = scalar_lea.vmem %s345, 20 [#allocation6]
        %v523 = vld [vmem:[%s522] sm:$0xf]
        %v524 = vld [vmem:[%s522 + $0x4] sm:$0xf]
        %v525 = vld [vmem:[%s522 + $0x8] sm:$0xf]
        %v526 = vld [vmem:[%s522 + $0xc] sm:$0xf]
        %v527 = vld [vmem:[%s522 + $0x10] sm:$0x1]
        %v533 = vunpack.c.l.b16 %v523
        %v534 = vunpack.c.l.b16 %v524
        %v535 = vunpack.c.l.b16 %v525
        %v536 = vunpack.c.l.b16 %v526
        %v537 = vunpack.c.l.b16 %v527
        %v538 = vpack.c.b16 %v534, %v533
        %v539 = vpack.c.b16 %v536, %v535
        %v540 = vpack.c.b16 %v537, %v537
        %v544 = vand.u32 %v540, %v437
        %546 = vmatprep.subr.bf16.mxu0 0
        %547 = vmatpush1.bf16.msra.mxu0 %v538
        %548 = vmatprep.subr.bf16.mxu0 0
        %549 = vmatpush1.bf16.msra.mxu0 %v539
        %550 = vmatprep.subr.bf16.mxu0 0
        %551 = vmatpush1.bf16.msra.mxu0 %v544
        %552 = vmatprep.subr.bf16.mxu0 0
        %553 = vmatpush1.bf16.msra.mxu0 0
        %554 = vmatprep.subr.bf16.mxu0 0
        %555 = vmatpush1.bf16.msra.mxu0 0
        %556 = vmatprep.subr.bf16.mxu0 0
        %557 = vmatpush1.bf16.msra.mxu0 0
        %558 = vmatprep.subr.bf16.mxu0 0
        %559 = vmatpush1.bf16.msra.mxu0 0
        %560 = vmatprep.subr.bf16.mxu0 0
        %561 = vmatpush1.bf16.msra.mxu0 0
        %562 = vmatprep.subr.bf16.mxu0 0
        %563 = vmatpush1.bf16.msra.mxu0 0
        %564 = vmatprep.subr.bf16.mxu0 0
        %565 = vmatpush1.bf16.msra.mxu0 0
        %566 = vmatprep.subr.bf16.mxu0 0
        %567 = vmatpush1.bf16.msra.mxu0 0
        %568 = vmatprep.subr.bf16.mxu0 0
        %569 = vmatpush1.bf16.msra.mxu0 0
        %570 = vmatprep.subr.bf16.mxu0 0
        %571 = vmatpush1.bf16.msra.mxu0 0
        %572 = vmatprep.subr.bf16.mxu0 0
        %573 = vmatpush1.bf16.msra.mxu0 0
        %574 = vmatprep.subr.bf16.mxu0 0
        %575 = vmatpush1.bf16.msra.mxu0 0
        %576 = vmatprep.subr.bf16.mxu0 0
        %577 = vmatpush1.bf16.msra.mxu0 0
        %578 = vmatprep.mubr.bf16.mxu0 0
        %579 = vmatmul.mubr.bf16.gmra.mrb[0].mxu0 %v421
        %v580 = vpop.f32.mrb[0].mxu0
        %v581 = vadd.f32 0.0, %v580
        %v582 = vpop.f32.mrb[0].mxu0
        %v583 = vpop.f32.mrb[0].mxu0
        %v584 = vadd.f32 0.0, %v583
        %v585 = vpop.f32.mrb[0].mxu0
        %586 = vmatprep.mubr.bf16.mxu0 0
        %587 = vmatmul.mubr.bf16.gmra.mrb[0].mxu0 %v424
        %v588 = vpop.f32.mrb[0].mxu0
        %v589 = vadd.f32 0.0, %v588
        %v590 = vpop.f32.mrb[0].mxu0
        %v591 = vpop.f32.mrb[0].mxu0
        %v592 = vadd.f32 0.0, %v591
        %v593 = vpop.f32.mrb[0].mxu0
        %594 = vmatprep.mubr.bf16.mxu0 0
        %595 = vmatmul.mubr.bf16.gmra.mrb[0].mxu0 %v427
        %v596 = vpop.f32.mrb[0].mxu0
        %v597 = vadd.f32 0.0, %v596
        %v598 = vpop.f32.mrb[0].mxu0
        %v599 = vpop.f32.mrb[0].mxu0
        %v600 = vadd.f32 0.0, %v599
        %v601 = vpop.f32.mrb[0].mxu0
        %602 = vmatprep.mubr.bf16.mxu0 0
        %603 = vmatmul.mubr.bf16.gmra.mrb[0].mxu0 %v430
        %v604 = vpop.f32.mrb[0].mxu0
        %v605 = vadd.f32 0.0, %v604
        %v606 = vpop.f32.mrb[0].mxu0
        %v607 = vpop.f32.mrb[0].mxu0
        %v608 = vadd.f32 0.0, %v607
        %v609 = vpop.f32.mrb[0].mxu0
        %610 = vmatprep.mubr.bf16.mxu0 0
        %611 = vmatmul.mubr.bf16.gmra.mrb[0].mxu0 %v433
        %v612 = vpop.f32.mrb[0].mxu0
        %v613 = vadd.f32 0.0, %v612
        %v614 = vpop.f32.mrb[0].mxu0
        %v615 = vpop.f32.mrb[0].mxu0
        %v616 = vpop.f32.mrb[0].mxu0
        %617 = vdwg.mxu0
        %s618 = scalar_lea.vmem [#allocation2], 32
        %619 = vst [vmem:[%s618] sm:$0xff] %v581
        %620 = vst [vmem:[%s618 + $0x8] sm:$0xff] %v584
        %621 = vst [vmem:[%s618 + $0x10] sm:$0xff] %v589
        %622 = vst [vmem:[%s618 + $0x18] sm:$0xff] %v592
        %s623 = scalar_lea.vmem [#allocation3], 32
        %624 = vst [vmem:[%s623] sm:$0xff] %v597
        %625 = vst [vmem:[%s623 + $0x8] sm:$0xff] %v600
        %626 = vst [vmem:[%s623 + $0x10] sm:$0xff] %v605
        %627 = vst [vmem:[%s623 + $0x18] sm:$0xff] %v608
        %s628 = scalar_lea.vmem [#allocation4], 4
        %629 = vst [vmem:[%s628] sm:$0xf] %v613
        %s630 = scalar_lea.vmem %s345, 40 [#allocation6]
        %v631 = vld [vmem:[%s630] sm:$0xf]
        %v632 = vld [vmem:[%s630 + $0x4] sm:$0xf]
        %v633 = vld [vmem:[%s630 + $0x8] sm:$0xf]
        %v634 = vld [vmem:[%s630 + $0xc] sm:$0xf]
        %v635 = vld [vmem:[%s630 + $0x10] sm:$0x1]
        %v641 = vunpack.c.l.b16 %v631
        %v642 = vunpack.c.l.b16 %v632
        %v643 = vunpack.c.l.b16 %v633
        %v644 = vunpack.c.l.b16 %v634
        %v645 = vunpack.c.l.b16 %v635
        %v646 = vpack.c.b16 %v642, %v641
        %v647 = vpack.c.b16 %v644, %v643
        %v648 = vpack.c.b16 %v645, %v645
        %v652 = vand.u32 %v648, %v437
        %654 = vmatprep.subr.bf16.mxu0 0
        %655 = vmatpush1.bf16.msra.mxu0 %v646
        %656 = vmatprep.subr.bf16.mxu0 0
        %657 = vmatpush1.bf16.msra.mxu0 %v647
        %658 = vmatprep.subr.bf16.mxu0 0
        %659 = vmatpush1.bf16.msra.mxu0 %v652
        %660 = vmatprep.subr.bf16.mxu0 0
        %661 = vmatpush1.bf16.msra.mxu0 0
        %662 = vmatprep.subr.bf16.mxu0 0
        %663 = vmatpush1.bf16.msra.mxu0 0
        %664 = vmatprep.subr.bf16.mxu0 0
        %665 = vmatpush1.bf16.msra.mxu0 0
        %666 = vmatprep.subr.bf16.mxu0 0
        %667 = vmatpush1.bf16.msra.mxu0 0
        %668 = vmatprep.subr.bf16.mxu0 0
        %669 = vmatpush1.bf16.msra.mxu0 0
        %670 = vmatprep.subr.bf16.mxu0 0
        %671 = vmatpush1.bf16.msra.mxu0 0
        %672 = vmatprep.subr.bf16.mxu0 0
        %673 = vmatpush1.bf16.msra.mxu0 0
        %674 = vmatprep.subr.bf16.mxu0 0
        %675 = vmatpush1.bf16.msra.mxu0 0
        %676 = vmatprep.subr.bf16.mxu0 0
        %677 = vmatpush1.bf16.msra.mxu0 0
        %678 = vmatprep.subr.bf16.mxu0 0
        %679 = vmatpush1.bf16.msra.mxu0 0
        %680 = vmatprep.subr.bf16.mxu0 0
        %681 = vmatpush1.bf16.msra.mxu0 0
        %682 = vmatprep.subr.bf16.mxu0 0
        %683 = vmatpush1.bf16.msra.mxu0 0
        %684 = vmatprep.subr.bf16.mxu0 0
        %685 = vmatpush1.bf16.msra.mxu0 0
        %686 = vmatprep.mubr.bf16.mxu0 0
        %687 = vmatmul.mubr.bf16.gmra.mrb[0].mxu0 %v421
        %v688 = vpop.f32.mrb[0].mxu0
        %v689 = vadd.f32 0.0, %v688
        %v690 = vpop.f32.mrb[0].mxu0
        %v691 = vpop.f32.mrb[0].mxu0
        %v692 = vadd.f32 0.0, %v691
        %v693 = vpop.f32.mrb[0].mxu0
        %694 = vmatprep.mubr.bf16.mxu0 0
        %695 = vmatmul.mubr.bf16.gmra.mrb[0].mxu0 %v424
        %v696 = vpop.f32.mrb[0].mxu0
        %v697 = vadd.f32 0.0, %v696
        %v698 = vpop.f32.mrb[0].mxu0
        %v699 = vpop.f32.mrb[0].mxu0
        %v700 = vadd.f32 0.0, %v699
        %v701 = vpop.f32.mrb[0].mxu0
        %702 = vmatprep.mubr.bf16.mxu0 0
        %703 = vmatmul.mubr.bf16.gmra.mrb[0].mxu0 %v427
        %v704 = vpop.f32.mrb[0].mxu0
        %v705 = vadd.f32 0.0, %v704
        %v706 = vpop.f32.mrb[0].mxu0
        %v707 = vpop.f32.mrb[0].mxu0
        %v708 = vadd.f32 0.0, %v707
        %v709 = vpop.f32.mrb[0].mxu0
        %710 = vmatprep.mubr.bf16.mxu0 0
        %711 = vmatmul.mubr.bf16.gmra.mrb[0].mxu0 %v430
        %v712 = vpop.f32.mrb[0].mxu0
        %v713 = vadd.f32 0.0, %v712
        %v714 = vpop.f32.mrb[0].mxu0
        %v715 = vpop.f32.mrb[0].mxu0
        %v716 = vadd.f32 0.0, %v715
        %v717 = vpop.f32.mrb[0].mxu0
        %718 = vmatprep.mubr.bf16.mxu0 0
        %719 = vmatmul.mubr.bf16.gmra.mrb[0].mxu0 %v433
        %v720 = vpop.f32.mrb[0].mxu0
        %v721 = vadd.f32 0.0, %v720
        %v722 = vpop.f32.mrb[0].mxu0
        %v723 = vpop.f32.mrb[0].mxu0
        %v724 = vpop.f32.mrb[0].mxu0
        %725 = vdwg.mxu0
        %s726 = scalar_lea.vmem [#allocation2], 64
        %727 = vst [vmem:[%s726] sm:$0xff] %v689
        %728 = vst [vmem:[%s726 + $0x8] sm:$0xff] %v692
        %729 = vst [vmem:[%s726 + $0x10] sm:$0xff] %v697
        %730 = vst [vmem:[%s726 + $0x18] sm:$0xff] %v700
        %s731 = scalar_lea.vmem [#allocation3], 64
        %732 = vst [vmem:[%s731] sm:$0xff] %v705
        %733 = vst [vmem:[%s731 + $0x8] sm:$0xff] %v708
        %734 = vst [vmem:[%s731 + $0x10] sm:$0xff] %v713
        %735 = vst [vmem:[%s731 + $0x18] sm:$0xff] %v716
        %s736 = scalar_lea.vmem [#allocation4], 8
        %737 = vst [vmem:[%s736] sm:$0xf] %v721
        %s738 = scalar_lea.vmem %s345, 60 [#allocation6]
        %v739 = vld [vmem:[%s738] sm:$0xf]
        %v740 = vld [vmem:[%s738 + $0x4] sm:$0xf]
        %v741 = vld [vmem:[%s738 + $0x8] sm:$0xf]
        %v742 = vld [vmem:[%s738 + $0xc] sm:$0xf]
        %v743 = vld [vmem:[%s738 + $0x10] sm:$0x1]
        %v749 = vunpack.c.l.b16 %v739
        %v750 = vunpack.c.l.b16 %v740
        %v751 = vunpack.c.l.b16 %v741
        %v752 = vunpack.c.l.b16 %v742
        %v753 = vunpack.c.l.b16 %v743
        %v754 = vpack.c.b16 %v750, %v749
        %v755 = vpack.c.b16 %v752, %v751
        %v756 = vpack.c.b16 %v753, %v753
        %v760 = vand.u32 %v756, %v437
        %762 = vmatprep.subr.bf16.mxu0 0
        %763 = vmatpush1.bf16.msra.mxu0 %v754
        %764 = vmatprep.subr.bf16.mxu0 0
        %765 = vmatpush1.bf16.msra.mxu0 %v755
        %766 = vmatprep.subr.bf16.mxu0 0
        %767 = vmatpush1.bf16.msra.mxu0 %v760
        %768 = vmatprep.subr.bf16.mxu0 0
        %769 = vmatpush1.bf16.msra.mxu0 0
        %770 = vmatprep.subr.bf16.mxu0 0
        %771 = vmatpush1.bf16.msra.mxu0 0
        %772 = vmatprep.subr.bf16.mxu0 0
        %773 = vmatpush1.bf16.msra.mxu0 0
        %774 = vmatprep.subr.bf16.mxu0 0
        %775 = vmatpush1.bf16.msra.mxu0 0
        %776 = vmatprep.subr.bf16.mxu0 0
        %777 = vmatpush1.bf16.msra.mxu0 0
        %778 = vmatprep.subr.bf16.mxu0 0
        %779 = vmatpush1.bf16.msra.mxu0 0
        %780 = vmatprep.subr.bf16.mxu0 0
        %781 = vmatpush1.bf16.msra.mxu0 0
        %782 = vmatprep.subr.bf16.mxu0 0
        %783 = vmatpush1.bf16.msra.mxu0 0
        %784 = vmatprep.subr.bf16.mxu0 0
        %785 = vmatpush1.bf16.msra.mxu0 0
        %786 = vmatprep.subr.bf16.mxu0 0
        %787 = vmatpush1.bf16.msra.mxu0 0
        %788 = vmatprep.subr.bf16.mxu0 0
        %789 = vmatpush1.bf16.msra.mxu0 0
        %790 = vmatprep.subr.bf16.mxu0 0
        %791 = vmatpush1.bf16.msra.mxu0 0
        %792 = vmatprep.subr.bf16.mxu0 0
        %793 = vmatpush1.bf16.msra.mxu0 0
        %794 = vmatprep.mubr.bf16.mxu0 0
        %795 = vmatmul.mubr.bf16.gmra.mrb[0].mxu0 %v421
        %v796 = vpop.f32.mrb[0].mxu0
        %v797 = vadd.f32 0.0, %v796
        %v798 = vpop.f32.mrb[0].mxu0
        %v799 = vpop.f32.mrb[0].mxu0
        %v800 = vadd.f32 0.0, %v799
        %v801 = vpop.f32.mrb[0].mxu0
        %802 = vmatprep.mubr.bf16.mxu0 0
        %803 = vmatmul.mubr.bf16.gmra.mrb[0].mxu0 %v424
        %v804 = vpop.f32.mrb[0].mxu0
        %v805 = vadd.f32 0.0, %v804
        %v806 = vpop.f32.mrb[0].mxu0
        %v807 = vpop.f32.mrb[0].mxu0
        %v808 = vadd.f32 0.0, %v807
        %v809 = vpop.f32.mrb[0].mxu0
        %810 = vmatprep.mubr.bf16.mxu0 0
        %811 = vmatmul.mubr.bf16.gmra.mrb[0].mxu0 %v427
        %v812 = vpop.f32.mrb[0].mxu0
        %v813 = vadd.f32 0.0, %v812
        %v814 = vpop.f32.mrb[0].mxu0
        %v815 = vpop.f32.mrb[0].mxu0
        %v816 = vadd.f32 0.0, %v815
        %v817 = vpop.f32.mrb[0].mxu0
        %818 = vmatprep.mubr.bf16.mxu0 0
        %819 = vmatmul.mubr.bf16.gmra.mrb[0].mxu0 %v430
        %v820 = vpop.f32.mrb[0].mxu0
        %v821 = vadd.f32 0.0, %v820
        %v822 = vpop.f32.mrb[0].mxu0
        %v823 = vpop.f32.mrb[0].mxu0
        %v824 = vadd.f32 0.0, %v823
        %v825 = vpop.f32.mrb[0].mxu0
        %826 = vmatprep.mubr.bf16.mxu0 0
        %827 = vmatmul.mubr.bf16.gmra.mrb[0].mxu0 %v433
        %v828 = vpop.f32.mrb[0].mxu0
        %v829 = vadd.f32 0.0, %v828
        %v830 = vpop.f32.mrb[0].mxu0
        %v831 = vpop.f32.mrb[0].mxu0
        %v832 = vpop.f32.mrb[0].mxu0
        %833 = vdwg.mxu0
        %s834 = scalar_lea.vmem [#allocation2], 96
        %835 = vst [vmem:[%s834] sm:$0xff] %v797
        %836 = vst [vmem:[%s834 + $0x8] sm:$0xff] %v800
        %837 = vst [vmem:[%s834 + $0x10] sm:$0xff] %v805
        %838 = vst [vmem:[%s834 + $0x18] sm:$0xff] %v808
        %s839 = scalar_lea.vmem [#allocation3], 96
        %840 = vst [vmem:[%s839] sm:$0xff] %v813
        %841 = vst [vmem:[%s839 + $0x8] sm:$0xff] %v816
        %842 = vst [vmem:[%s839 + $0x10] sm:$0xff] %v821
        %843 = vst [vmem:[%s839 + $0x18] sm:$0xff] %v824
        %s844 = scalar_lea.vmem [#allocation4], 12
        %845 = vst [vmem:[%s844] sm:$0xf] %v829
        %s846 = scalar_lea.vmem %s345, 80 [#allocation6]
        %v847 = vld [vmem:[%s846] sm:$0xf]
        %v848 = vld [vmem:[%s846 + $0x4] sm:$0xf]
        %v849 = vld [vmem:[%s846 + $0x8] sm:$0xf]
        %v850 = vld [vmem:[%s846 + $0xc] sm:$0xf]
        %v851 = vld [vmem:[%s846 + $0x10] sm:$0x1]
        %v857 = vunpack.c.l.b16 %v847
        %v858 = vunpack.c.l.b16 %v848
        %v859 = vunpack.c.l.b16 %v849
        %v860 = vunpack.c.l.b16 %v850
        %v861 = vunpack.c.l.b16 %v851
        %v862 = vpack.c.b16 %v858, %v857
        %v863 = vpack.c.b16 %v860, %v859
        %v864 = vpack.c.b16 %v861, %v861
        %v868 = vand.u32 %v864, %v437
        %870 = vmatprep.subr.bf16.mxu0 0
        %871 = vmatpush1.bf16.msra.mxu0 %v862
        %872 = vmatprep.subr.bf16.mxu0 0
        %873 = vmatpush1.bf16.msra.mxu0 %v863
        %874 = vmatprep.subr.bf16.mxu0 0
        %875 = vmatpush1.bf16.msra.mxu0 %v868
        %876 = vmatprep.subr.bf16.mxu0 0
        %877 = vmatpush1.bf16.msra.mxu0 0
        %878 = vmatprep.subr.bf16.mxu0 0
        %879 = vmatpush1.bf16.msra.mxu0 0
        %880 = vmatprep.subr.bf16.mxu0 0
        %881 = vmatpush1.bf16.msra.mxu0 0
        %882 = vmatprep.subr.bf16.mxu0 0
        %883 = vmatpush1.bf16.msra.mxu0 0
        %884 = vmatprep.subr.bf16.mxu0 0
        %885 = vmatpush1.bf16.msra.mxu0 0
        %886 = vmatprep.subr.bf16.mxu0 0
        %887 = vmatpush1.bf16.msra.mxu0 0
        %888 = vmatprep.subr.bf16.mxu0 0
        %889 = vmatpush1.bf16.msra.mxu0 0
        %890 = vmatprep.subr.bf16.mxu0 0
        %891 = vmatpush1.bf16.msra.mxu0 0
        %892 = vmatprep.subr.bf16.mxu0 0
        %893 = vmatpush1.bf16.msra.mxu0 0
        %894 = vmatprep.subr.bf16.mxu0 0
        %895 = vmatpush1.bf16.msra.mxu0 0
        %896 = vmatprep.subr.bf16.mxu0 0
        %897 = vmatpush1.bf16.msra.mxu0 0
        %898 = vmatprep.subr.bf16.mxu0 0
        %899 = vmatpush1.bf16.msra.mxu0 0
        %900 = vmatprep.subr.bf16.mxu0 0
        %901 = vmatpush1.bf16.msra.mxu0 0
        %902 = vmatprep.mubr.bf16.mxu0 0
        %903 = vmatmul.mubr.bf16.gmra.mrb[0].mxu0 %v421
        %v904 = vpop.f32.mrb[0].mxu0
        %v905 = vadd.f32 0.0, %v904
        %v906 = vpop.f32.mrb[0].mxu0
        %v907 = vpop.f32.mrb[0].mxu0
        %v908 = vadd.f32 0.0, %v907
        %v909 = vpop.f32.mrb[0].mxu0
        %910 = vmatprep.mubr.bf16.mxu0 0
        %911 = vmatmul.mubr.bf16.gmra.mrb[0].mxu0 %v424
        %v912 = vpop.f32.mrb[0].mxu0
        %v913 = vadd.f32 0.0, %v912
        %v914 = vpop.f32.mrb[0].mxu0
        %v915 = vpop.f32.mrb[0].mxu0
        %v916 = vadd.f32 0.0, %v915
        %v917 = vpop.f32.mrb[0].mxu0
        %918 = vmatprep.mubr.bf16.mxu0 0
        %919 = vmatmul.mubr.bf16.gmra.mrb[0].mxu0 %v427
        %v920 = vpop.f32.mrb[0].mxu0
        %v921 = vadd.f32 0.0, %v920
        %v922 = vpop.f32.mrb[0].mxu0
        %v923 = vpop.f32.mrb[0].mxu0
        %v924 = vadd.f32 0.0, %v923
        %v925 = vpop.f32.mrb[0].mxu0
        %926 = vmatprep.mubr.bf16.mxu0 0
        %927 = vmatmul.mubr.bf16.gmra.mrb[0].mxu0 %v430
        %v928 = vpop.f32.mrb[0].mxu0
        %v929 = vadd.f32 0.0, %v928
        %v930 = vpop.f32.mrb[0].mxu0
        %v931 = vpop.f32.mrb[0].mxu0
        %v932 = vadd.f32 0.0, %v931
        %v933 = vpop.f32.mrb[0].mxu0
        %934 = vmatprep.mubr.bf16.mxu0 0
        %935 = vmatmul.mubr.bf16.gmra.mrb[0].mxu0 %v433
        %v936 = vpop.f32.mrb[0].mxu0
        %v937 = vadd.f32 0.0, %v936
        %v938 = vpop.f32.mrb[0].mxu0
        %v939 = vpop.f32.mrb[0].mxu0
        %v940 = vpop.f32.mrb[0].mxu0
        %941 = vdwg.mxu0
        %s942 = scalar_lea.vmem [#allocation2], 128
        %943 = vst [vmem:[%s942] sm:$0xff] %v905
        %944 = vst [vmem:[%s942 + $0x8] sm:$0xff] %v908
        %945 = vst [vmem:[%s942 + $0x10] sm:$0xff] %v913
        %946 = vst [vmem:[%s942 + $0x18] sm:$0xff] %v916
        %s947 = scalar_lea.vmem [#allocation3], 128
        %948 = vst [vmem:[%s947] sm:$0xff] %v921
        %949 = vst [vmem:[%s947 + $0x8] sm:$0xff] %v924
        %950 = vst [vmem:[%s947 + $0x10] sm:$0xff] %v929
        %951 = vst [vmem:[%s947 + $0x18] sm:$0xff] %v932
        %s952 = scalar_lea.vmem [#allocation4], 16
        %953 = vst [vmem:[%s952] sm:$0xf] %v937
        %s954 = scalar_lea.vmem %s345, 100 [#allocation6]
        %v955 = vld [vmem:[%s954] sm:$0xf]
        %v956 = vld [vmem:[%s954 + $0x4] sm:$0xf]
        %v957 = vld [vmem:[%s954 + $0x8] sm:$0xf]
        %v958 = vld [vmem:[%s954 + $0xc] sm:$0xf]
        %v959 = vld [vmem:[%s954 + $0x10] sm:$0x1]
        %v965 = vunpack.c.l.b16 %v955
        %v966 = vunpack.c.l.b16 %v956
        %v967 = vunpack.c.l.b16 %v957
        %v968 = vunpack.c.l.b16 %v958
        %v969 = vunpack.c.l.b16 %v959
        %v970 = vpack.c.b16 %v966, %v965
        %v971 = vpack.c.b16 %v968, %v967
        %v972 = vpack.c.b16 %v969, %v969
        %v976 = vand.u32 %v972, %v437
        %978 = vmatprep.subr.bf16.mxu0 0
        %979 = vmatpush1.bf16.msra.mxu0 %v970
        %980 = vmatprep.subr.bf16.mxu0 0
        %981 = vmatpush1.bf16.msra.mxu0 %v971
        %982 = vmatprep.subr.bf16.mxu0 0
        %983 = vmatpush1.bf16.msra.mxu0 %v976
        %984 = vmatprep.subr.bf16.mxu0 0
        %985 = vmatpush1.bf16.msra.mxu0 0
        %986 = vmatprep.subr.bf16.mxu0 0
        %987 = vmatpush1.bf16.msra.mxu0 0
        %988 = vmatprep.subr.bf16.mxu0 0
        %989 = vmatpush1.bf16.msra.mxu0 0
        %990 = vmatprep.subr.bf16.mxu0 0
        %991 = vmatpush1.bf16.msra.mxu0 0
        %992 = vmatprep.subr.bf16.mxu0 0
        %993 = vmatpush1.bf16.msra.mxu0 0
        %994 = vmatprep.subr.bf16.mxu0 0
        %995 = vmatpush1.bf16.msra.mxu0 0
        %996 = vmatprep.subr.bf16.mxu0 0
        %997 = vmatpush1.bf16.msra.mxu0 0
        %998 = vmatprep.subr.bf16.mxu0 0
        %999 = vmatpush1.bf16.msra.mxu0 0
        %1000 = vmatprep.subr.bf16.mxu0 0
        %1001 = vmatpush1.bf16.msra.mxu0 0
        %1002 = vmatprep.subr.bf16.mxu0 0
        %1003 = vmatpush1.bf16.msra.mxu0 0
        %1004 = vmatprep.subr.bf16.mxu0 0
        %1005 = vmatpush1.bf16.msra.mxu0 0
        %1006 = vmatprep.subr.bf16.mxu0 0
        %1007 = vmatpush1.bf16.msra.mxu0 0
        %1008 = vmatprep.subr.bf16.mxu0 0
        %1009 = vmatpush1.bf16.msra.mxu0 0
        %1010 = vmatprep.mubr.bf16.mxu0 0
        %1011 = vmatmul.mubr.bf16.gmra.mrb[0].mxu0 %v421
        %v1012 = vpop.f32.mrb[0].mxu0
        %v1013 = vadd.f32 0.0, %v1012
        %v1014 = vpop.f32.mrb[0].mxu0
        %v1015 = vpop.f32.mrb[0].mxu0
        %v1016 = vadd.f32 0.0, %v1015
        %v1017 = vpop.f32.mrb[0].mxu0
        %1018 = vmatprep.mubr.bf16.mxu0 0
        %1019 = vmatmul.mubr.bf16.gmra.mrb[0].mxu0 %v424
        %v1020 = vpop.f32.mrb[0].mxu0
        %v1021 = vadd.f32 0.0, %v1020
        %v1022 = vpop.f32.mrb[0].mxu0
        %v1023 = vpop.f32.mrb[0].mxu0
        %v1024 = vadd.f32 0.0, %v1023
        %v1025 = vpop.f32.mrb[0].mxu0
        %1026 = vmatprep.mubr.bf16.mxu0 0
        %1027 = vmatmul.mubr.bf16.gmra.mrb[0].mxu0 %v427
        %v1028 = vpop.f32.mrb[0].mxu0
        %v1029 = vadd.f32 0.0, %v1028
        %v1030 = vpop.f32.mrb[0].mxu0
        %v1031 = vpop.f32.mrb[0].mxu0
        %v1032 = vadd.f32 0.0, %v1031
        %v1033 = vpop.f32.mrb[0].mxu0
        %1034 = vmatprep.mubr.bf16.mxu0 0
        %1035 = vmatmul.mubr.bf16.gmra.mrb[0].mxu0 %v430
        %v1036 = vpop.f32.mrb[0].mxu0
        %v1037 = vadd.f32 0.0, %v1036
        %v1038 = vpop.f32.mrb[0].mxu0
        %v1039 = vpop.f32.mrb[0].mxu0
        %v1040 = vadd.f32 0.0, %v1039
        %v1041 = vpop.f32.mrb[0].mxu0
        %1042 = vmatprep.mubr.bf16.mxu0 0
        %1043 = vmatmul.mubr.bf16.gmra.mrb[0].mxu0 %v433
        %v1044 = vpop.f32.mrb[0].mxu0
        %v1045 = vadd.f32 0.0, %v1044
        %v1046 = vpop.f32.mrb[0].mxu0
        %v1047 = vpop.f32.mrb[0].mxu0
        %v1048 = vpop.f32.mrb[0].mxu0
        %1049 = vdwg.mxu0
        %s1050 = scalar_lea.vmem [#allocation2], 160
        %1051 = vst [vmem:[%s1050] sm:$0xff] %v1013
        %1052 = vst [vmem:[%s1050 + $0x8] sm:$0xff] %v1016
        %1053 = vst [vmem:[%s1050 + $0x10] sm:$0xff] %v1021
        %1054 = vst [vmem:[%s1050 + $0x18] sm:$0xff] %v1024
        %s1055 = scalar_lea.vmem [#allocation3], 160
        %1056 = vst [vmem:[%s1055] sm:$0xff] %v1029
        %1057 = vst [vmem:[%s1055 + $0x8] sm:$0xff] %v1032
        %1058 = vst [vmem:[%s1055 + $0x10] sm:$0xff] %v1037
        %1059 = vst [vmem:[%s1055 + $0x18] sm:$0xff] %v1040
        %s1060 = scalar_lea.vmem [#allocation4], 20
        %1061 = vst [vmem:[%s1060] sm:$0xf] %v1045
        %s1062 = scalar_lea.vmem %s345, 120 [#allocation6]
        %v1063 = vld [vmem:[%s1062] sm:$0xf]
        %v1064 = vld [vmem:[%s1062 + $0x4] sm:$0xf]
        %v1065 = vld [vmem:[%s1062 + $0x8] sm:$0xf]
        %v1066 = vld [vmem:[%s1062 + $0xc] sm:$0xf]
        %v1067 = vld [vmem:[%s1062 + $0x10] sm:$0x1]
        %v1073 = vunpack.c.l.b16 %v1063
        %v1074 = vunpack.c.l.b16 %v1064
        %v1075 = vunpack.c.l.b16 %v1065
        %v1076 = vunpack.c.l.b16 %v1066
        %v1077 = vunpack.c.l.b16 %v1067
        %v1078 = vpack.c.b16 %v1074, %v1073
        %v1079 = vpack.c.b16 %v1076, %v1075
        %v1080 = vpack.c.b16 %v1077, %v1077
        %v1084 = vand.u32 %v1080, %v437
        %1086 = vmatprep.subr.bf16.mxu0 0
        %1087 = vmatpush1.bf16.msra.mxu0 %v1078
        %1088 = vmatprep.subr.bf16.mxu0 0
        %1089 = vmatpush1.bf16.msra.mxu0 %v1079
        %1090 = vmatprep.subr.bf16.mxu0 0
        %1091 = vmatpush1.bf16.msra.mxu0 %v1084
        %1092 = vmatprep.subr.bf16.mxu0 0
        %1093 = vmatpush1.bf16.msra.mxu0 0
        %1094 = vmatprep.subr.bf16.mxu0 0
        %1095 = vmatpush1.bf16.msra.mxu0 0
        %1096 = vmatprep.subr.bf16.mxu0 0
        %1097 = vmatpush1.bf16.msra.mxu0 0
        %1098 = vmatprep.subr.bf16.mxu0 0
        %1099 = vmatpush1.bf16.msra.mxu0 0
        %1100 = vmatprep.subr.bf16.mxu0 0
        %1101 = vmatpush1.bf16.msra.mxu0 0
        %1102 = vmatprep.subr.bf16.mxu0 0
        %1103 = vmatpush1.bf16.msra.mxu0 0
        %1104 = vmatprep.subr.bf16.mxu0 0
        %1105 = vmatpush1.bf16.msra.mxu0 0
        %1106 = vmatprep.subr.bf16.mxu0 0
        %1107 = vmatpush1.bf16.msra.mxu0 0
        %1108 = vmatprep.subr.bf16.mxu0 0
        %1109 = vmatpush1.bf16.msra.mxu0 0
        %1110 = vmatprep.subr.bf16.mxu0 0
        %1111 = vmatpush1.bf16.msra.mxu0 0
        %1112 = vmatprep.subr.bf16.mxu0 0
        %1113 = vmatpush1.bf16.msra.mxu0 0
        %1114 = vmatprep.subr.bf16.mxu0 0
        %1115 = vmatpush1.bf16.msra.mxu0 0
        %1116 = vmatprep.subr.bf16.mxu0 0
        %1117 = vmatpush1.bf16.msra.mxu0 0
        %1118 = vmatprep.mubr.bf16.mxu0 0
        %1119 = vmatmul.mubr.bf16.gmra.mrb[0].mxu0 %v421
        %v1120 = vpop.f32.mrb[0].mxu0
        %v1121 = vadd.f32 0.0, %v1120
        %v1122 = vpop.f32.mrb[0].mxu0
        %v1123 = vpop.f32.mrb[0].mxu0
        %v1124 = vadd.f32 0.0, %v1123
        %v1125 = vpop.f32.mrb[0].mxu0
        %1126 = vmatprep.mubr.bf16.mxu0 0
        %1127 = vmatmul.mubr.bf16.gmra.mrb[0].mxu0 %v424
        %v1128 = vpop.f32.mrb[0].mxu0
        %v1129 = vadd.f32 0.0, %v1128
        %v1130 = vpop.f32.mrb[0].mxu0
        %v1131 = vpop.f32.mrb[0].mxu0
        %v1132 = vadd.f32 0.0, %v1131
        %v1133 = vpop.f32.mrb[0].mxu0
        %1134 = vmatprep.mubr.bf16.mxu0 0
        %1135 = vmatmul.mubr.bf16.gmra.mrb[0].mxu0 %v427
        %v1136 = vpop.f32.mrb[0].mxu0
        %v1137 = vadd.f32 0.0, %v1136
        %v1138 = vpop.f32.mrb[0].mxu0
        %v1139 = vpop.f32.mrb[0].mxu0
        %v1140 = vadd.f32 0.0, %v1139
        %v1141 = vpop.f32.mrb[0].mxu0
        %1142 = vmatprep.mubr.bf16.mxu0 0
        %1143 = vmatmul.mubr.bf16.gmra.mrb[0].mxu0 %v430
        %v1144 = vpop.f32.mrb[0].mxu0
        %v1145 = vadd.f32 0.0, %v1144
        %v1146 = vpop.f32.mrb[0].mxu0
        %v1147 = vpop.f32.mrb[0].mxu0
        %v1148 = vadd.f32 0.0, %v1147
        %v1149 = vpop.f32.mrb[0].mxu0
        %1150 = vmatprep.mubr.bf16.mxu0 0
        %1151 = vmatmul.mubr.bf16.gmra.mrb[0].mxu0 %v433
        %v1152 = vpop.f32.mrb[0].mxu0
        %v1153 = vadd.f32 0.0, %v1152
        %v1154 = vpop.f32.mrb[0].mxu0
        %v1155 = vpop.f32.mrb[0].mxu0
        %v1156 = vpop.f32.mrb[0].mxu0
        %1157 = vdwg.mxu0
        %s1158 = scalar_lea.vmem [#allocation2], 192
        %1159 = vst [vmem:[%s1158] sm:$0xff] %v1121
        %1160 = vst [vmem:[%s1158 + $0x8] sm:$0xff] %v1124
        %1161 = vst [vmem:[%s1158 + $0x10] sm:$0xff] %v1129
        %1162 = vst [vmem:[%s1158 + $0x18] sm:$0xff] %v1132
        %s1163 = scalar_lea.vmem [#allocation3], 192
        %1164 = vst [vmem:[%s1163] sm:$0xff] %v1137
        %1165 = vst [vmem:[%s1163 + $0x8] sm:$0xff] %v1140
        %1166 = vst [vmem:[%s1163 + $0x10] sm:$0xff] %v1145
        %1167 = vst [vmem:[%s1163 + $0x18] sm:$0xff] %v1148
        %s1168 = scalar_lea.vmem [#allocation4], 24
        %1169 = vst [vmem:[%s1168] sm:$0xf] %v1153
        %s1170 = scalar_lea.vmem %s345, 140 [#allocation6]
        %v1171 = vld [vmem:[%s1170] sm:$0xf]
        %v1172 = vld [vmem:[%s1170 + $0x4] sm:$0xf]
        %v1173 = vld [vmem:[%s1170 + $0x8] sm:$0xf]
        %v1174 = vld [vmem:[%s1170 + $0xc] sm:$0xf]
        %v1175 = vld [vmem:[%s1170 + $0x10] sm:$0x1]
        %v1181 = vunpack.c.l.b16 %v1171
        %v1182 = vunpack.c.l.b16 %v1172
        %v1183 = vunpack.c.l.b16 %v1173
        %v1184 = vunpack.c.l.b16 %v1174
        %v1185 = vunpack.c.l.b16 %v1175
        %v1186 = vpack.c.b16 %v1182, %v1181
        %v1187 = vpack.c.b16 %v1184, %v1183
        %v1188 = vpack.c.b16 %v1185, %v1185
        %v1192 = vand.u32 %v1188, %v437
        %1194 = vmatprep.subr.bf16.mxu0 0
        %1195 = vmatpush1.bf16.msra.mxu0 %v1186
        %1196 = vmatprep.subr.bf16.mxu0 0
        %1197 = vmatpush1.bf16.msra.mxu0 %v1187
        %1198 = vmatprep.subr.bf16.mxu0 0
        %1199 = vmatpush1.bf16.msra.mxu0 %v1192
        %1200 = vmatprep.subr.bf16.mxu0 0
        %1201 = vmatpush1.bf16.msra.mxu0 0
        %1202 = vmatprep.subr.bf16.mxu0 0
        %1203 = vmatpush1.bf16.msra.mxu0 0
        %1204 = vmatprep.subr.bf16.mxu0 0
        %1205 = vmatpush1.bf16.msra.mxu0 0
        %1206 = vmatprep.subr.bf16.mxu0 0
        %1207 = vmatpush1.bf16.msra.mxu0 0
        %1208 = vmatprep.subr.bf16.mxu0 0
        %1209 = vmatpush1.bf16.msra.mxu0 0
        %1210 = vmatprep.subr.bf16.mxu0 0
        %1211 = vmatpush1.bf16.msra.mxu0 0
        %1212 = vmatprep.subr.bf16.mxu0 0
        %1213 = vmatpush1.bf16.msra.mxu0 0
        %1214 = vmatprep.subr.bf16.mxu0 0
        %1215 = vmatpush1.bf16.msra.mxu0 0
        %1216 = vmatprep.subr.bf16.mxu0 0
        %1217 = vmatpush1.bf16.msra.mxu0 0
        %1218 = vmatprep.subr.bf16.mxu0 0
        %1219 = vmatpush1.bf16.msra.mxu0 0
        %1220 = vmatprep.subr.bf16.mxu0 0
        %1221 = vmatpush1.bf16.msra.mxu0 0
        %1222 = vmatprep.subr.bf16.mxu0 0
        %1223 = vmatpush1.bf16.msra.mxu0 0
        %1224 = vmatprep.subr.bf16.mxu0 0
        %1225 = vmatpush1.bf16.msra.mxu0 0
        %1226 = vmatprep.mubr.bf16.mxu0 0
        %1227 = vmatmul.mubr.bf16.gmra.mrb[0].mxu0 %v421
        %v1228 = vpop.f32.mrb[0].mxu0
        %v1229 = vadd.f32 0.0, %v1228
        %v1230 = vpop.f32.mrb[0].mxu0
        %v1231 = vpop.f32.mrb[0].mxu0
        %v1232 = vadd.f32 0.0, %v1231
        %v1233 = vpop.f32.mrb[0].mxu0
        %1234 = vmatprep.mubr.bf16.mxu0 0
        %1235 = vmatmul.mubr.bf16.gmra.mrb[0].mxu0 %v424
        %v1236 = vpop.f32.mrb[0].mxu0
        %v1237 = vadd.f32 0.0, %v1236
        %v1238 = vpop.f32.mrb[0].mxu0
        %v1239 = vpop.f32.mrb[0].mxu0
        %v1240 = vadd.f32 0.0, %v1239
        %v1241 = vpop.f32.mrb[0].mxu0
        %1242 = vmatprep.mubr.bf16.mxu0 0
        %1243 = vmatmul.mubr.bf16.gmra.mrb[0].mxu0 %v427
        %v1244 = vpop.f32.mrb[0].mxu0
        %v1245 = vadd.f32 0.0, %v1244
        %v1246 = vpop.f32.mrb[0].mxu0
        %v1247 = vpop.f32.mrb[0].mxu0
        %v1248 = vadd.f32 0.0, %v1247
        %v1249 = vpop.f32.mrb[0].mxu0
        %1250 = vmatprep.mubr.bf16.mxu0 0
        %1251 = vmatmul.mubr.bf16.gmra.mrb[0].mxu0 %v430
        %v1252 = vpop.f32.mrb[0].mxu0
        %v1253 = vadd.f32 0.0, %v1252
        %v1254 = vpop.f32.mrb[0].mxu0
        %v1255 = vpop.f32.mrb[0].mxu0
        %v1256 = vadd.f32 0.0, %v1255
        %v1257 = vpop.f32.mrb[0].mxu0
        %1258 = vmatprep.mubr.bf16.mxu0 0
        %1259 = vmatmul.mubr.bf16.gmra.mrb[0].mxu0 %v433
        %v1260 = vpop.f32.mrb[0].mxu0
        %v1261 = vadd.f32 0.0, %v1260
        %v1262 = vpop.f32.mrb[0].mxu0
        %v1263 = vpop.f32.mrb[0].mxu0
        %v1264 = vpop.f32.mrb[0].mxu0
        %1265 = vdwg.mxu0
        %s1266 = scalar_lea.vmem [#allocation2], 224
        %1267 = vst [vmem:[%s1266] sm:$0xff] %v1229
        %1268 = vst [vmem:[%s1266 + $0x8] sm:$0xff] %v1232
        %1269 = vst [vmem:[%s1266 + $0x10] sm:$0xff] %v1237
        %1270 = vst [vmem:[%s1266 + $0x18] sm:$0xff] %v1240
        %s1271 = scalar_lea.vmem [#allocation3], 224
        %1272 = vst [vmem:[%s1271] sm:$0xff] %v1245
        %1273 = vst [vmem:[%s1271 + $0x8] sm:$0xff] %v1248
        %1274 = vst [vmem:[%s1271 + $0x10] sm:$0xff] %v1253
        %1275 = vst [vmem:[%s1271 + $0x18] sm:$0xff] %v1256
        %s1276 = scalar_lea.vmem [#allocation4], 28
        %1277 = vst [vmem:[%s1276] sm:$0xf] %v1261
        %1278 = vst [vmem:[#allocation5] sm:$0xf] -inf
        loop: start=0, step=1, limit=8
        $region74: #{tpu_custom_call.1} parent=68 // loop_pre_header
          _
        $region75: #{tpu_custom_call.1} parent=68 // loop_header
          %s1280 = sphi 0, %s1284
          %p1281 = scmp.ge.s32.totalorder %s1280, 8
        $region76: #{tpu_custom_call.1} parent=68 // loop_header_branch
          %1283 = sbr.rel (%p1281) target = $region80
        $region77: #{tpu_custom_call.1} parent=68 // loop_body
          %s1285 = smul.u32 %s1280, 32
          %s1286 = scalar_lea.vmem [#allocation2], %s1285
          %v1287 = vld [vmem:[%s1286] sm:$0xff]
          %v1288 = vld [vmem:[%s1286 + $0x8] sm:$0xff]
          %v1289 = vld [vmem:[%s1286 + $0x10] sm:$0xff]
          %v1290 = vld [vmem:[%s1286 + $0x18] sm:$0xff]
          %v1291 = vld [vmem:[#allocation3] sm:$0xff]
          %v1292 = vld [vmem:[#allocation3 + $0x8] sm:$0xff]
          %v1293 = vld [vmem:[#allocation3 + $0x10] sm:$0xff]
          %v1294 = vld [vmem:[#allocation3 + $0x18] sm:$0xff]
          %v1295 = vld [vmem:[#allocation3 + $0x20] sm:$0xff]
          %v1296 = vld [vmem:[#allocation3 + $0x28] sm:$0xff]
          %v1297 = vld [vmem:[#allocation3 + $0x30] sm:$0xff]
          %v1298 = vld [vmem:[#allocation3 + $0x38] sm:$0xff]
          %v1299 = vld [vmem:[#allocation3 + $0x40] sm:$0xff]
          %v1300 = vld [vmem:[#allocation3 + $0x48] sm:$0xff]
          %v1301 = vld [vmem:[#allocation3 + $0x50] sm:$0xff]
          %v1302 = vld [vmem:[#allocation3 + $0x58] sm:$0xff]
          %v1303 = vld [vmem:[#allocation3 + $0x60] sm:$0xff]
          %v1304 = vld [vmem:[#allocation3 + $0x68] sm:$0xff]
          %v1305 = vld [vmem:[#allocation3 + $0x70] sm:$0xff]
          %v1306 = vld [vmem:[#allocation3 + $0x78] sm:$0xff]
          %v1307 = vld [vmem:[#allocation3 + $0x80] sm:$0xff]
          %v1308 = vld [vmem:[#allocation3 + $0x88] sm:$0xff]
          %v1309 = vld [vmem:[#allocation3 + $0x90] sm:$0xff]
          %v1310 = vld [vmem:[#allocation3 + $0x98] sm:$0xff]
          %v1311 = vld [vmem:[#allocation3 + $0xa0] sm:$0xff]
          %v1312 = vld [vmem:[#allocation3 + $0xa8] sm:$0xff]
          %v1313 = vld [vmem:[#allocation3 + $0xb0] sm:$0xff]
          %v1314 = vld [vmem:[#allocation3 + $0xb8] sm:$0xff]
          %v1315 = vld [vmem:[#allocation3 + $0xc0] sm:$0xff]
          %v1316 = vld [vmem:[#allocation3 + $0xc8] sm:$0xff]
          %v1317 = vld [vmem:[#allocation3 + $0xd0] sm:$0xff]
          %v1318 = vld [vmem:[#allocation3 + $0xd8] sm:$0xff]
          %v1319 = vld [vmem:[#allocation3 + $0xe0] sm:$0xff]
          %v1320 = vld [vmem:[#allocation3 + $0xe8] sm:$0xff]
          %v1321 = vld [vmem:[#allocation3 + $0xf0] sm:$0xff]
          %v1322 = vld [vmem:[#allocation3 + $0xf8] sm:$0xff]
          %v1323 = vmul.f32 %v1291, %v1287
          %v1324 = vmul.f32 %v1292, %v1288
          %v1325 = vmul.f32 %v1293, %v1289
          %v1326 = vmul.f32 %v1294, %v1290
          %v1327 = vmul.f32 %v1295, %v1287
          %v1328 = vmul.f32 %v1296, %v1288
          %v1329 = vmul.f32 %v1297, %v1289
          %v1330 = vmul.f32 %v1298, %v1290
          %v1331 = vmul.f32 %v1299, %v1287
          %v1332 = vmul.f32 %v1300, %v1288
          %v1333 = vmul.f32 %v1301, %v1289
          %v1334 = vmul.f32 %v1302, %v1290
          %v1335 = vmul.f32 %v1303, %v1287
          %v1336 = vmul.f32 %v1304, %v1288
          %v1337 = vmul.f32 %v1305, %v1289
          %v1338 = vmul.f32 %v1306, %v1290
          %v1339 = vmul.f32 %v1307, %v1287
          %v1340 = vmul.f32 %v1308, %v1288
          %v1341 = vmul.f32 %v1309, %v1289
          %v1342 = vmul.f32 %v1310, %v1290
          %v1343 = vmul.f32 %v1311, %v1287
          %v1344 = vmul.f32 %v1312, %v1288
          %v1345 = vmul.f32 %v1313, %v1289
          %v1346 = vmul.f32 %v1314, %v1290
          %v1347 = vmul.f32 %v1315, %v1287
          %v1348 = vmul.f32 %v1316, %v1288
          %v1349 = vmul.f32 %v1317, %v1289
          %v1350 = vmul.f32 %v1318, %v1290
          %v1351 = vmul.f32 %v1319, %v1287
          %v1352 = vmul.f32 %v1320, %v1288
          %v1353 = vmul.f32 %v1321, %v1289
          %v1354 = vmul.f32 %v1322, %v1290
          %v1355 = vadd.f32 %v1323, %v1324
          %v1356 = vadd.f32 %v1355, %v1325
          %v1357 = vadd.f32 %v1356, %v1326
          %v1358 = vrot.slane %v1357, 4
          %v1359 = vadd.f32 %v1357, %v1358
          %v1360 = vrot.slane %v1359, 2
          %v1361 = vadd.f32 %v1359, %v1360
          %v1362 = vrot.slane %v1361, 1
          %v1363 = vadd.f32 %v1361, %v1362
          %v1364 = vadd.f32 %v1327, %v1328
          %v1365 = vadd.f32 %v1364, %v1329
          %v1366 = vadd.f32 %v1365, %v1330
          %v1367 = vrot.slane %v1366, 4
          %v1368 = vadd.f32 %v1366, %v1367
          %v1369 = vrot.slane %v1368, 2
          %v1370 = vadd.f32 %v1368, %v1369
          %v1371 = vrot.slane %v1370, 1
          %v1372 = vadd.f32 %v1370, %v1371
          %v1373 = vadd.f32 %v1331, %v1332
          %v1374 = vadd.f32 %v1373, %v1333
          %v1375 = vadd.f32 %v1374, %v1334
          %v1376 = vrot.slane %v1375, 4
          %v1377 = vadd.f32 %v1375, %v1376
          %v1378 = vrot.slane %v1377, 2
          %v1379 = vadd.f32 %v1377, %v1378
          %v1380 = vrot.slane %v1379, 1
          %v1381 = vadd.f32 %v1379, %v1380
          %v1382 = vadd.f32 %v1335, %v1336
          %v1383 = vadd.f32 %v1382, %v1337
          %v1384 = vadd.f32 %v1383, %v1338
          %v1385 = vrot.slane %v1384, 4
          %v1386 = vadd.f32 %v1384, %v1385
          %v1387 = vrot.slane %v1386, 2
          %v1388 = vadd.f32 %v1386, %v1387
          %v1389 = vrot.slane %v1388, 1
          %v1390 = vadd.f32 %v1388, %v1389
          %v1391 = vadd.f32 %v1339, %v1340
          %v1392 = vadd.f32 %v1391, %v1341
          %v1393 = vadd.f32 %v1392, %v1342
          %v1394 = vrot.slane %v1393, 4
          %v1395 = vadd.f32 %v1393, %v1394
          %v1396 = vrot.slane %v1395, 2
          %v1397 = vadd.f32 %v1395, %v1396
          %v1398 = vrot.slane %v1397, 1
          %v1399 = vadd.f32 %v1397, %v1398
          %v1400 = vadd.f32 %v1343, %v1344
          %v1401 = vadd.f32 %v1400, %v1345
          %v1402 = vadd.f32 %v1401, %v1346
          %v1403 = vrot.slane %v1402, 4
          %v1404 = vadd.f32 %v1402, %v1403
          %v1405 = vrot.slane %v1404, 2
          %v1406 = vadd.f32 %v1404, %v1405
          %v1407 = vrot.slane %v1406, 1
          %v1408 = vadd.f32 %v1406, %v1407
          %v1409 = vadd.f32 %v1347, %v1348
          %v1410 = vadd.f32 %v1409, %v1349
          %v1411 = vadd.f32 %v1410, %v1350
          %v1412 = vrot.slane %v1411, 4
          %v1413 = vadd.f32 %v1411, %v1412
          %v1414 = vrot.slane %v1413, 2
          %v1415 = vadd.f32 %v1413, %v1414
          %v1416 = vrot.slane %v1415, 1
          %v1417 = vadd.f32 %v1415, %v1416
          %v1418 = vadd.f32 %v1351, %v1352
          %v1419 = vadd.f32 %v1418, %v1353
          %v1420 = vadd.f32 %v1419, %v1354
          %v1421 = vrot.slane %v1420, 4
          %v1422 = vadd.f32 %v1420, %v1421
          %v1423 = vrot.slane %v1422, 2
          %v1424 = vadd.f32 %v1422, %v1423
          %v1425 = vrot.slane %v1424, 1
          %v1426 = vadd.f32 %v1424, %v1425
          %v1427 = vmax.f32 %v1363, %v1399
          %v1428 = vmax.f32 %v1372, %v1408
          %v1429 = vmax.f32 %v1381, %v1417
          %v1430 = vmax.f32 %v1390, %v1426
          %v1431 = vmax.f32 %v1427, %v1428
          %v1432 = vmax.f32 %v1429, %v1430
          %v1433 = vmax.f32 %v1431, %v1432
          %v1434 = vsub.f32 %v1363, %v1433
          %v1435 = vsub.f32 %v1372, %v1433
          %v1436 = vsub.f32 %v1381, %v1433
          %v1437 = vsub.f32 %v1390, %v1433
          %v1438 = vsub.f32 %v1399, %v1433
          %v1439 = vsub.f32 %v1408, %v1433
          %v1440 = vsub.f32 %v1417, %v1433
          %v1441 = vsub.f32 %v1426, %v1433
          %v1442 = vmul.f32 %v1434, 1.442695
          %v1443 = vpow.pop %v1442
          %v1444 = vmul.f32 %v1435, 1.442695
          %v1445 = vpow.pop %v1444
          %v1446 = vmul.f32 %v1436, 1.442695
          %v1447 = vpow.pop %v1446
          %v1448 = vmul.f32 %v1437, 1.442695
          %v1449 = vpow.pop %v1448
          %v1450 = vmul.f32 %v1438, 1.442695
          %v1451 = vpow.pop %v1450
          %v1452 = vmul.f32 %v1439, 1.442695
          %v1453 = vpow.pop %v1452
          %v1454 = vmul.f32 %v1440, 1.442695
          %v1455 = vpow.pop %v1454
          %v1456 = vmul.f32 %v1441, 1.442695
          %v1457 = vpow.pop %v1456
          %v1466 = vrot.slane %v1445, 7
          %vm1467 = vcmask 1041409
          %v1468 = vsel %vm1467, %v1466, %v1443
          %v1469 = vrot.slane %v1447, 6
          %vm1470 = vcmask 1042434
          %v1471 = vsel %vm1470, %v1469, %v1468
          %v1472 = vrot.slane %v1449, 5
          %vm1473 = vcmask 1043459
          %v1474 = vsel %vm1473, %v1472, %v1471
          %v1475 = vrot.slane %v1451, 4
          %vm1476 = vcmask 1044484
          %v1477 = vsel %vm1476, %v1475, %v1474
          %v1478 = vrot.slane %v1453, 3
          %vm1479 = vcmask 1045509
          %v1480 = vsel %vm1479, %v1478, %v1477
          %v1481 = vrot.slane %v1455, 2
          %vm1482 = vcmask 1046534
          %v1483 = vsel %vm1482, %v1481, %v1480
          %v1484 = vrot.slane %v1457, 1
          %vm1485 = vcmask 1047559
          %v1486 = vsel %vm1485, %v1484, %v1483
          %v1488 = vrot.slane %v1486, 4
          %v1489 = vadd.f32 %v1486, %v1488
          %v1490 = vrot.slane %v1489, 2
          %v1491 = vadd.f32 %v1489, %v1490
          %v1492 = vrot.slane %v1491, 1
          %v1493 = vadd.f32 %v1491, %v1492
          %v1494 = vrcp.pop %v1493
          %v1495 = vld [vmem:[#allocation4] sm:$0xf]
          %v1496 = vld [vmem:[#allocation4 + $0x4] sm:$0xf]
          %v1497 = vld [vmem:[#allocation4 + $0x8] sm:$0xf]
          %v1498 = vld [vmem:[#allocation4 + $0xc] sm:$0xf]
          %v1499 = vld [vmem:[#allocation4 + $0x10] sm:$0xf]
          %v1500 = vld [vmem:[#allocation4 + $0x14] sm:$0xf]
          %v1501 = vld [vmem:[#allocation4 + $0x18] sm:$0xf]
          %v1502 = vld [vmem:[#allocation4 + $0x1c] sm:$0xf]
          %v1503 = vlaneseq
          %v1504 = vshrl.u32 %v1503, 7
          %v1505 = vsub.s32 0, %v1504
          %v1506 = vrot.slane %v1443, %v1505
          %v1507 = vlaneseq
          %v1508 = vshrl.u32 %v1507, 7
          %v1509 = vsub.s32 0, %v1508
          %v1510 = vrot.slane %v1445, %v1509
          %v1511 = vlaneseq
          %v1512 = vshrl.u32 %v1511, 7
          %v1513 = vsub.s32 0, %v1512
          %v1514 = vrot.slane %v1447, %v1513
          %v1515 = vlaneseq
          %v1516 = vshrl.u32 %v1515, 7
          %v1517 = vsub.s32 0, %v1516
          %v1518 = vrot.slane %v1449, %v1517
          %v1519 = vlaneseq
          %v1520 = vshrl.u32 %v1519, 7
          %v1521 = vsub.s32 0, %v1520
          %v1522 = vrot.slane %v1451, %v1521
          %v1523 = vlaneseq
          %v1524 = vshrl.u32 %v1523, 7
          %v1525 = vsub.s32 0, %v1524
          %v1526 = vrot.slane %v1453, %v1525
          %v1527 = vlaneseq
          %v1528 = vshrl.u32 %v1527, 7
          %v1529 = vsub.s32 0, %v1528
          %v1530 = vrot.slane %v1455, %v1529
          %v1531 = vlaneseq
          %v1532 = vshrl.u32 %v1531, 7
          %v1533 = vsub.s32 0, %v1532
          %v1534 = vrot.slane %v1457, %v1533
          %v1535 = vmul.f32 %v1506, %v1495
          %v1536 = vmul.f32 %v1510, %v1496
          %v1537 = vmul.f32 %v1514, %v1497
          %v1538 = vmul.f32 %v1518, %v1498
          %v1539 = vmul.f32 %v1522, %v1499
          %v1540 = vmul.f32 %v1526, %v1500
          %v1541 = vmul.f32 %v1530, %v1501
          %v1542 = vmul.f32 %v1534, %v1502
          %vm1543 = vcmask 1043456
          %v1544 = vsel %vm1543, %v1535, 0.0
          %v1545 = vsel %vm1543, %v1536, 0.0
          %v1546 = vadd.f32 %v1544, %v1545
          %v1547 = vsel %vm1543, %v1537, 0.0
          %v1548 = vadd.f32 %v1546, %v1547
          %v1549 = vsel %vm1543, %v1538, 0.0
          %v1550 = vadd.f32 %v1548, %v1549
          %v1551 = vsel %vm1543, %v1539, 0.0
          %v1552 = vadd.f32 %v1550, %v1551
          %v1553 = vsel %vm1543, %v1540, 0.0
          %v1554 = vadd.f32 %v1552, %v1553
          %v1555 = vsel %vm1543, %v1541, 0.0
          %v1556 = vadd.f32 %v1554, %v1555
          %v1557 = vsel %vm1543, %v1542, 0.0
          %v1558 = vadd.f32 %v1556, %v1557
          %v1559 = vlaneseq
          %v1560 = vshrl.u32 %v1559, 7
          %v1561 = vsub.s32 0, %v1560
          %v1562 = vrot.slane %v1494, %v1561
          %v1563 = vmul.f32 %v1558, %v1562
          %v1564 = vld [vmem:[#allocation5] sm:$0xf]
          %v1565 = vmax.f32 %v1564, %v1563
          %1566 = vst [vmem:[#allocation5] sm:$0xf] %v1565
        $region78: #{tpu_custom_call.1} parent=68 // loop_footer
          %s1284 = sadd.s32 1, %s1280
        $region79: #{tpu_custom_call.1} parent=68 // loop_footer_branch
          %1279 = sbr.rel target = $region75
        $region80: #{tpu_custom_call.1} parent=68 // loop_exit
          _
        %v1567 = vld [vmem:[%s2] sm:$0xf]
        %1569 = vset.pattern.permute.xlu0 0
        %1570 = vperm.xlu0 %1569, %v1567
        %v1571 = vpop.permute.xlu0 %1570
        %v1573 = vld [vmem:[#allocation5] sm:$0xf]
        %v1574 = vadd.f32 %v1573, %v1571
        %1575 = vst [vmem:[%s365] sm:$0xf] %v1574
        %s1576 = sand.u32 %s93, 1
        %s1577 = scalar_lea.sflag [#allocation8], %s1576
        %s1578 = sand.u32 %s93, 1
        %s1579 = smul.addr %s1578, 4
        %s1580 = scalar_lea.vmem [#allocation7], %s1579
        // Predicated region
        $region81: #{tpu_custom_call.1} parent=68 // pred_check
          %p1581 = pneg %p103
        $region82: #{tpu_custom_call.1} parent=68 // pred_check_branch
          %1583 = sbr.rel (%p1581) target = $region84
        $region83: #{tpu_custom_call.1} parent=68 // pred_region
          %s1585 = ssub.s32 64, 64
          %1586 = vsyncadd %s1577, %s1585
          %s1587 = smul.addr %s17, 64
          %s1588 = scalar_lea.hbm %s3, %s1587
          %s1590 = sshll.u32 %s1580, 4
          %s1591 = int_to_ptr.vmem [resolvable:$true] %s1590
          %1593 = dma.vmem_to_hbm [thread:$0]  %s1591, 64, %s1588, %s1577
        $region84: #{tpu_custom_call.1} parent=68 // pred_fallthru
          _
      $region69: #{tpu_custom_call.1} parent=5 // pred_fallthru
        _
      %p1594 = scmp.le.s32.totalorder 2, %s12
      // Predicated region
      $region85: #{tpu_custom_call.1} parent=5 // pred_check
        %p1595 = pneg %p1594
      $region86: #{tpu_custom_call.1} parent=5 // pred_check_branch
        %1597 = sbr.rel (%p1595) target = $region88
      $region87: #{tpu_custom_call.1} parent=5 // pred_region
        %s1598 = ssub.s32 %s12, 2
        // Predicated region
        $region89: #{tpu_custom_call.1} parent=87 // pred_check
          %p1599 = pneg %p109
        $region90: #{tpu_custom_call.1} parent=87 // pred_check_branch
          %1601 = sbr.rel (%p1599) target = $region92
        $region91: #{tpu_custom_call.1} parent=87 // pred_region
          %s1602 = sand.u32 %s94, 1
          %s1603 = scalar_lea.sflag [#allocation8], %s1602
          %s1604 = sand.u32 %s94, 1
          %s1605 = smul.addr %s1604, 4
          %s1606 = scalar_lea.vmem [#allocation7], %s1605
          %1607 = dma.done %s1603, 64
        $region92: #{tpu_custom_call.1} parent=87 // pred_fallthru
          _
      $region88: #{tpu_custom_call.1} parent=5 // pred_fallthru
        _
    $region6: #{tpu_custom_call.1} parent=1 // loop_footer
      %s16 = sadd.s32 1, %s12
    $region7: #{tpu_custom_call.1} parent=1 // loop_footer_branch
      %11 = sbr.rel target = $region3
    $region8: #{tpu_custom_call.1} parent=1 // loop_exit
      _
    %1608 = vsyncpa [#allocation8], 1
    %s1609 = scalar_lea.sflag [#allocation8], 1
    %1610 = vsyncpa %s1609, 1

</llo_original>
